<compile_context>
chip_gen: v6e
topology: v6e:2x2x1
jax: 0.10.0
libtpu: 0.0.40
codegen_flags: <defaults>
</compile_context>

<pallas_src>
import functools

import jax
import jax.numpy as jnp
from jax.experimental import pallas as pl
from jax.experimental.pallas import tpu as pltpu


def _round_up(x, m):
    return (x + m - 1) // m * m


def _pick_tm(mp):
    """Pixel-tile width: big tiles amortize the ~0.35us/grid-step pipeline cost,
    while keeping >= 2 grid steps so both v7x TensorCores get work."""
    tm = 2048
    while tm > 256 and _round_up(mp, tm) // tm < 2:
        tm //= 2
    return tm


def _convlstm_kernel(w_ref, b_ref, mask_ref,
                     x_lo_ref, x_mid_ref, x_hi_ref,
                     h_lo_ref, h_mid_ref, h_hi_ref,
                     c_prev_ref, h_out_ref, c_out_ref, *, starts):
    """Fused 3x3 conv (one deep-K MXU dot) + LSTM gate math on one pixel tile.

    w_ref      : (4*C_out, 9*C_tot_p) bf16   conv weight, tap-major contraction axis
    b_ref      : (4*C_out, 1)         f32
    mask_ref   : (1, tm)              f32    1 on valid interior pixels, else 0
    x_*_ref    : (C_in_p, 128/tm/128) bf16   left halo / tile / right halo of x
    h_*_ref    : (C_out,  128/tm/128) f32    left halo / tile / right halo of h
    c_prev_ref : (C_out, tm)          f32
    h_out_ref  : (C_out, tm)          f32
    c_out_ref  : (C_out, tm)          f32
    """
    tm = x_mid_ref.shape[-1]
    c_out = c_prev_ref.shape[0]

    # Window = [left halo (128) | current tile (tm) | right halo (128)].
    xw = jnp.concatenate([x_lo_ref[...], x_mid_ref[...], x_hi_ref[...]], axis=-1)
    hw = jnp.concatenate([h_lo_ref[...], h_mid_ref[...], h_hi_ref[...]],
                         axis=-1).astype(jnp.bfloat16)
    cw = jnp.concatenate([xw, hw], axis=0)                 # (C_tot_p, tm + 256) bf16

    # Deep-K conv input: stack the 9 shifted tap slices along the contraction axis.
    stack = jnp.concatenate([cw[:, s:s + tm] for s in starts], axis=0)

    gates = jnp.dot(w_ref[...], stack,
                    preferred_element_type=jnp.float32) + b_ref[...]   # (4*C_out, tm)

    i_g = jax.nn.sigmoid(gates[0 * c_out:1 * c_out, :])
    f_g = jax.nn.sigmoid(gates[1 * c_out:2 * c_out, :])
    g_g = jnp.tanh(gates[2 * c_out:3 * c_out, :])
    o_g = jax.nn.sigmoid(gates[3 * c_out:4 * c_out, :])

    # In-kernel masking keeps spatial-padding / grid-padding columns exactly zero,
    # so the state feeds straight back into the next step's zero-padded conv.
    c_new = (f_g * c_prev_ref[...] + i_g * g_g) * mask_ref[...]
    h_new = o_g * jnp.tanh(c_new)                          # tanh(0)=0 -> h masked too

    h_out_ref[...] = h_new
    c_out_ref[...] = c_new


@functools.partial(jax.jit, static_argnames=("tm",))
def conv_lstm_step(x_nchw, h_flat, c_flat, mask, w_flat, b_col, *, tm):
    """One ConvLSTM step.

    x_nchw : [N, C_in, H, W] f32
    h_flat : [C_out, Mg] f32   hidden state, channel-major padded-interior flat
    c_flat : [C_out, Mg] f32   cell state, same layout
    mask   : [1, Mg]     f32   1 on valid interior pixels (< Mp), else 0
    w_flat : [4*C_out, 9*(C_in_p + C_out)] bf16
    b_col  : [4*C_out, 1] f32

    Returns (h_nchw, h_flat_new, c_flat_new).
    """
    n, c_in, hh, ww = x_nchw.shape
    c_out = h_flat.shape[0]
    c_in_p = _round_up(c_in, 8)
    wp = ww + 2                               # padded row width
    sp = (hh + 2) * wp                        # padded pixels per image
    mp = n * sp                               # total padded pixels
    mg = h_flat.shape[1]                      # grid-covered columns
    bpt = tm // 128                           # 128-lane blocks per tile
    nblk = mg // 128

    assert tm % 128 == 0 and mg % tm == 0
    assert wp + 1 <= 128, "image width must be <= 126 for the 128-lane halo"
    assert c_out % 8 == 0, "C_out must be a multiple of 8 (sublane-aligned gates)"
    assert w_flat.shape == (4 * c_out, 9 * (c_in_p + c_out))

    # Channel-major, spatially zero-padded, flattened frame (padded-interior anchored).
    x_t = jnp.transpose(x_nchw, (1, 0, 2, 3))                         # [C_in, N, H, W]
    x_p = jnp.pad(x_t, ((0, c_in_p - c_in), (0, 0), (1, 1), (1, 1)))  # [C_in_p, N, H+2, W+2]
    x_flat = jnp.pad(x_p.reshape(c_in_p, mp),
                     ((0, 0), (0, mg - mp))).astype(jnp.bfloat16)

    # Tap (dy, dx) of output column q reads column q + dy*wp + dx - (wp+1); inside the
    # [128 | tm | 128] halo window that is the static lane offset below.
    starts = tuple(128 - (wp + 1) + dy * wp + dx
                   for dy in range(3) for dx in range(3))
    kernel = functools.partial(_convlstm_kernel, starts=starts)

    lo = lambda i: (0, jnp.maximum(i * bpt - 1, 0))        # clamped: i=0 reads garbage,
    hi = lambda i: (0, jnp.minimum((i + 1) * bpt, nblk - 1))  # but only for masked pixels
    mid = lambda i: (0, i)

    h_new, c_new = pl.pallas_call(
        kernel,
        out_shape=(jax.ShapeDtypeStruct((c_out, mg), jnp.float32),
                   jax.ShapeDtypeStruct((c_out, mg), jnp.float32)),
        grid_spec=pltpu.PrefetchScalarGridSpec(
            num_scalar_prefetch=0,
            grid=(mg // tm,),
            in_specs=[
                pl.BlockSpec((4 * c_out, w_flat.shape[1]), lambda i: (0, 0)),  # weights
                pl.BlockSpec((4 * c_out, 1), lambda i: (0, 0)),                # bias
                pl.BlockSpec((1, tm), mid),                                    # valid mask
                pl.BlockSpec((c_in_p, 128), lo),                               # x left halo
                pl.BlockSpec((c_in_p, tm), mid),                               # x tile
                pl.BlockSpec((c_in_p, 128), hi),                               # x right halo
                pl.BlockSpec((c_out, 128), lo),                                # h left halo
                pl.BlockSpec((c_out, tm), mid),                                # h tile
                pl.BlockSpec((c_out, 128), hi),                                # h right halo
                pl.BlockSpec((c_out, tm), mid),                                # c tile
            ],
            out_specs=[pl.BlockSpec((c_out, tm), mid),
                       pl.BlockSpec((c_out, tm), mid)],
        ),
        compiler_params=pltpu.CompilerParams(
            dimension_semantics=("parallel",),
            vmem_limit_bytes=32 * 1024 * 1024),
    )(w_flat, b_col, mask, x_flat, x_flat, x_flat, h_flat, h_flat, h_flat, c_flat)

    h_nchw = jnp.transpose(
        h_new[:, :mp].reshape(c_out, n, hh + 2, ww + 2)[:, :, 1:hh + 1, 1:ww + 1],
        (1, 0, 2, 3))
    return h_nchw, h_new, c_new


class RecurrentLayerPallas:
    """JAX/Pallas port of Recurrent_layer (ConvRNN, cell='lstm')."""

    def __init__(self, input_channels, output_channels, key):
        assert output_channels % 8 == 0
        self.c_in = input_channels
        self.c_out = output_channels
        c_tot = input_channels + output_channels
        kw, kb = jax.random.split(key)
        scale = 1.0 / jnp.sqrt(c_tot * 9)
        # Conv2d(C_in + C_out, 4*C_out, 3, padding=1) parameters (PyTorch layout).
        self.weight = scale * jax.random.normal(
            kw, (4 * output_channels, c_tot, 3, 3), dtype=jnp.float32)
        self.bias = scale * jax.random.normal(
            kb, (4 * output_channels,), dtype=jnp.float32)

        # Kernel-facing weight: (4*C_out, 9*(C_in_p + C_out)) bf16, tap-major K axis
        # (K index = tap*(C_in_p + C_out) + channel, x channels first then h channels).
        c_in_p = _round_up(input_channels, 8)
        self.c_in_p = c_in_p
        w_x = jnp.pad(self.weight[:, :input_channels],
                      ((0, 0), (0, c_in_p - input_channels), (0, 0), (0, 0)))
        w_cat = jnp.concatenate([w_x, self.weight[:, input_channels:]], axis=1)
        self.w_flat = jnp.transpose(w_cat, (0, 2, 3, 1)).reshape(
            4 * output_channels, 9 * (c_in_p + output_channels)).astype(jnp.bfloat16)
        self.b_col = self.bias.reshape(4 * output_channels, 1)

        self.state = None   # (h_flat, c_flat): (C_out, Mg) f32, padded-interior anchored
        self._geom = None   # cached (shape key, tm, mg, mask)

    def _geometry(self, n, hh, ww):
        key = (n, hh, ww)
        if self._geom is None or self._geom[0] != key:
            wp = ww + 2
            mp = n * (hh + 2) * wp
            tm = _pick_tm(mp)
            mg = _round_up(mp, tm)
            mimg = jnp.zeros((hh + 2, ww + 2), jnp.float32)
            mimg = mimg.at[1:hh + 1, 1:ww + 1].set(1.0)
            mask = jnp.pad(jnp.tile(mimg.reshape(-1), (n,)),
                           (0, mg - mp)).reshape(1, mg)
            self._geom = (key, tm, mg, mask)
        return self._geom[1], self._geom[2], self._geom[3]

    def reset(self, mask=None):
        # TODO(synk): original ConvRNN.reset(mask) supports per-sample masked reset;
        # only a full state reset is implemented here.
        self.state = None

    def detach(self):
        # No autograd tape in this inference-only JAX port.
        pass

    def __call__(self, x_nchw):
        n, c_in, hh, ww = x_nchw.shape
        assert c_in == self.c_in
        tm, mg, mask = self._geometry(n, hh, ww)
        if self.state is None or self.state[0].shape[1] != mg:
            h = jnp.zeros((self.c_out, mg), jnp.float32)
            c = jnp.zeros((self.c_out, mg), jnp.float32)
        else:
            h, c = self.state
        h_nchw, h_new, c_new = conv_lstm_step(
            x_nchw, h, c, mask, self.w_flat, self.b_col, tm=tm)
        self.state = (h_new, c_new)
        return h_nchw


def _reference_step(x_nchw, h_nchw, c_nchw, w_torch, bias):
    """Pure-JAX ConvLSTM reference (lax.conv; bf16 conv inputs to match the kernel)."""
    x = jnp.transpose(x_nchw, (0, 2, 3, 1))
    h = jnp.transpose(h_nchw, (0, 2, 3, 1))
    c = jnp.transpose(c_nchw, (0, 2, 3, 1))
    xh = jnp.concatenate([x, h], axis=-1).astype(jnp.bfloat16)
    w_hwio = jnp.transpose(w_torch, (2, 3, 1, 0)).astype(jnp.bfloat16)
    gates = jax.lax.conv_general_dilated(
        xh, w_hwio, (1, 1), "SAME",
        dimension_numbers=("NHWC", "HWIO", "NHWC"),
        preferred_element_type=jnp.float32) + bias
    co = c.shape[-1]
    i_g = jax.nn.sigmoid(gates[..., 0 * co:1 * co])
    f_g = jax.nn.sigmoid(gates[..., 1 * co:2 * co])
    g_g = jnp.tanh(gates[..., 2 * co:3 * co])
    o_g = jax.nn.sigmoid(gates[..., 3 * co:4 * co])
    c_new = f_g * c + i_g * g_g
    h_new = o_g * jnp.tanh(c_new)
    return (jnp.transpose(h_new, (0, 3, 1, 2)),
            jnp.transpose(c_new, (0, 3, 1, 2)))


if __name__ == "__main__":
    key = jax.random.PRNGKey(0)
    k_param, k_x1, k_x2 = jax.random.split(key, 3)

    N, C_IN, C_OUT, H, W = 2, 4, 8, 16, 16
    layer = RecurrentLayerPallas(C_IN, C_OUT, k_param)
    x1 = jax.random.normal(k_x1, (N, C_IN, H, W), dtype=jnp.float32)
    x2 = jax.random.normal(k_x2, (N, C_IN, H, W), dtype=jnp.float32)

    out1 = layer(x1)                    # step 1 (state starts at zero)
    out2 = layer(x2)                    # step 2 (exercises the recurrence)
    out2 = jax.block_until_ready(out2)
    assert out1.shape == (N, C_OUT, H, W) and out2.shape == (N, C_OUT, H, W)

    # Check both steps against a pure-JAX lax.conv reference.
    h0 = jnp.zeros((N, C_OUT, H, W), jnp.float32)
    c0 = jnp.zeros((N, C_OUT, H, W), jnp.float32)
    h1, c1 = _reference_step(x1, h0, c0, layer.weight, layer.bias)
    h2, c2 = _reference_step(x2, h1, c1, layer.weight, layer.bias)
    err1 = float(jnp.max(jnp.abs(out1 - h1)))
    err2 = float(jnp.max(jnp.abs(out2 - h2)))
    assert err1 < 2e-3, f"step-1 mismatch: {err1}"
    assert err2 < 2e-3, f"step-2 mismatch: {err2}"

    print("KERNEL_OK")
</pallas_src>

<mosaic_0001>
module attributes {stable_mosaic.version = 11 : i64} {
  func.func @_convlstm_kernel(%arg0: i32, %arg1: memref<32x144xbf16, #tpu.memory_space<vmem>>, %arg2: memref<32x1xf32, #tpu.memory_space<vmem>>, %arg3: memref<1x512xf32, #tpu.memory_space<vmem>>, %arg4: memref<8x128xbf16, #tpu.memory_space<vmem>>, %arg5: memref<8x512xbf16, #tpu.memory_space<vmem>>, %arg6: memref<8x128xbf16, #tpu.memory_space<vmem>>, %arg7: memref<8x128xf32, #tpu.memory_space<vmem>>, %arg8: memref<8x512xf32, #tpu.memory_space<vmem>>, %arg9: memref<8x128xf32, #tpu.memory_space<vmem>>, %arg10: memref<8x512xf32, #tpu.memory_space<vmem>>, %arg11: memref<8x512xf32, #tpu.memory_space<vmem>>, %arg12: memref<8x512xf32, #tpu.memory_space<vmem>>) attributes {dimension_semantics = [#tpu.dimension_semantics<parallel>], iteration_bounds = array<i64: 2>, scalar_prefetch = 0 : i64, scratch_operands = 0 : i64, tpu.core_type = #tpu.core_type<tc>, window_params = [{pipeline_mode = #tpu.pipeline_mode<synchronous>, transform_indices = @transform_0, window_bounds = array<i64: 32, 144>}, {pipeline_mode = #tpu.pipeline_mode<synchronous>, transform_indices = @transform_1, window_bounds = array<i64: 32, 1>}, {transform_indices = @transform_2, window_bounds = array<i64: 1, 512>}, {transform_indices = @transform_3, window_bounds = array<i64: 8, 128>}, {transform_indices = @transform_4, window_bounds = array<i64: 8, 512>}, {transform_indices = @transform_5, window_bounds = array<i64: 8, 128>}, {transform_indices = @transform_6, window_bounds = array<i64: 8, 128>}, {transform_indices = @transform_7, window_bounds = array<i64: 8, 512>}, {transform_indices = @transform_8, window_bounds = array<i64: 8, 128>}, {transform_indices = @transform_9, window_bounds = array<i64: 8, 512>}, {transform_indices = @transform_10, window_bounds = array<i64: 8, 512>}, {transform_indices = @transform_11, window_bounds = array<i64: 8, 512>}]} {
    %c0 = arith.constant 0 : index
    %c0_0 = arith.constant 0 : index
    %0 = vector.load %arg4[%c0, %c0_0] : memref<8x128xbf16, #tpu.memory_space<vmem>>, vector<8x128xbf16>
    %c0_1 = arith.constant 0 : index
    %c0_2 = arith.constant 0 : index
    %1 = vector.load %arg5[%c0_1, %c0_2] : memref<8x512xbf16, #tpu.memory_space<vmem>>, vector<8x512xbf16>
    %c0_3 = arith.constant 0 : index
    %c0_4 = arith.constant 0 : index
    %2 = vector.load %arg6[%c0_3, %c0_4] : memref<8x128xbf16, #tpu.memory_space<vmem>>, vector<8x128xbf16>
    %3 = tpu.concatenate %0, %1, %2 in 1 : vector<8x128xbf16>, vector<8x512xbf16>, vector<8x128xbf16> -> vector<8x768xbf16>
    %c0_5 = arith.constant 0 : index
    %c0_6 = arith.constant 0 : index
    %4 = vector.load %arg7[%c0_5, %c0_6] : memref<8x128xf32, #tpu.memory_space<vmem>>, vector<8x128xf32>
    %c0_7 = arith.constant 0 : index
    %c0_8 = arith.constant 0 : index
    %5 = vector.load %arg8[%c0_7, %c0_8] : memref<8x512xf32, #tpu.memory_space<vmem>>, vector<8x512xf32>
    %c0_9 = arith.constant 0 : index
    %c0_10 = arith.constant 0 : index
    %6 = vector.load %arg9[%c0_9, %c0_10] : memref<8x128xf32, #tpu.memory_space<vmem>>, vector<8x128xf32>
    %7 = tpu.concatenate %4, %5, %6 in 1 : vector<8x128xf32>, vector<8x512xf32>, vector<8x128xf32> -> vector<8x768xf32>
    %8 = arith.truncf %7 : vector<8x768xf32> to vector<8x768xbf16>
    %9 = tpu.concatenate %3, %8 in 0 : vector<8x768xbf16>, vector<8x768xbf16> -> vector<16x768xbf16>
    %10 = vector.extract_strided_slice %9 {offsets = [0, 109], sizes = [16, 512], strides = [1, 1]} : vector<16x768xbf16> to vector<16x512xbf16>
    %11 = vector.extract_strided_slice %9 {offsets = [0, 110], sizes = [16, 512], strides = [1, 1]} : vector<16x768xbf16> to vector<16x512xbf16>
    %12 = vector.extract_strided_slice %9 {offsets = [0, 111], sizes = [16, 512], strides = [1, 1]} : vector<16x768xbf16> to vector<16x512xbf16>
    %13 = vector.extract_strided_slice %9 {offsets = [0, 127], sizes = [16, 512], strides = [1, 1]} : vector<16x768xbf16> to vector<16x512xbf16>
    %14 = vector.extract_strided_slice %9 {offsets = [0, 128], sizes = [16, 512], strides = [1, 1]} : vector<16x768xbf16> to vector<16x512xbf16>
    %15 = vector.extract_strided_slice %9 {offsets = [0, 129], sizes = [16, 512], strides = [1, 1]} : vector<16x768xbf16> to vector<16x512xbf16>
    %16 = vector.extract_strided_slice %9 {offsets = [0, 145], sizes = [16, 512], strides = [1, 1]} : vector<16x768xbf16> to vector<16x512xbf16>
    %17 = vector.extract_strided_slice %9 {offsets = [0, 146], sizes = [16, 512], strides = [1, 1]} : vector<16x768xbf16> to vector<16x512xbf16>
    %18 = vector.extract_strided_slice %9 {offsets = [0, 147], sizes = [16, 512], strides = [1, 1]} : vector<16x768xbf16> to vector<16x512xbf16>
    %19 = tpu.concatenate %10, %11, %12, %13, %14, %15, %16, %17, %18 in 0 : vector<16x512xbf16>, vector<16x512xbf16>, vector<16x512xbf16>, vector<16x512xbf16>, vector<16x512xbf16>, vector<16x512xbf16>, vector<16x512xbf16>, vector<16x512xbf16>, vector<16x512xbf16> -> vector<144x512xbf16>
    %c0_11 = arith.constant 0 : index
    %c0_12 = arith.constant 0 : index
    %20 = vector.load %arg1[%c0_11, %c0_12] : memref<32x144xbf16, #tpu.memory_space<vmem>>, vector<32x144xbf16>
    %cst = arith.constant dense<0.000000e+00> : vector<32x512xf32>
    %21 = tpu.matmul %20, %19, %cst {dimension_numbers = #tpu.dot_dimension_numbers<[1], [0], [0], [1], [0, 0, 1, 1], [], []>} : vector<32x144xbf16>, vector<144x512xbf16>, vector<32x512xf32> -> vector<32x512xf32>
    %c0_13 = arith.constant 0 : index
    %c0_14 = arith.constant 0 : index
    %22 = vector.load %arg2[%c0_13, %c0_14] : memref<32x1xf32, #tpu.memory_space<vmem>>, vector<32x1xf32>
    %23 = vector.broadcast %22 : vector<32x1xf32> to vector<32x512xf32>
    %24 = arith.addf %21, %23 : vector<32x512xf32>
    %25 = vector.extract_strided_slice %24 {offsets = [0, 0], sizes = [8, 512], strides = [1, 1]} : vector<32x512xf32> to vector<8x512xf32>
    %26 = arith.negf %25 : vector<8x512xf32>
    %27 = math.exp %26 : vector<8x512xf32>
    %cst_15 = arith.constant 1.000000e+00 : f32
    %28 = vector.broadcast %cst_15 : f32 to vector<8x512xf32>
    %29 = arith.addf %28, %27 : vector<8x512xf32>
    %30 = arith.divf %28, %29 : vector<8x512xf32>
    %31 = vector.extract_strided_slice %24 {offsets = [8, 0], sizes = [8, 512], strides = [1, 1]} : vector<32x512xf32> to vector<8x512xf32>
    %32 = arith.negf %31 : vector<8x512xf32>
    %33 = math.exp %32 : vector<8x512xf32>
    %cst_16 = arith.constant 1.000000e+00 : f32
    %34 = vector.broadcast %cst_16 : f32 to vector<8x512xf32>
    %35 = arith.addf %34, %33 : vector<8x512xf32>
    %36 = arith.divf %34, %35 : vector<8x512xf32>
    %37 = vector.extract_strided_slice %24 {offsets = [16, 0], sizes = [8, 512], strides = [1, 1]} : vector<32x512xf32> to vector<8x512xf32>
    %38 = math.tanh %37 : vector<8x512xf32>
    %39 = vector.extract_strided_slice %24 {offsets = [24, 0], sizes = [8, 512], strides = [1, 1]} : vector<32x512xf32> to vector<8x512xf32>
    %40 = arith.negf %39 : vector<8x512xf32>
    %41 = math.exp %40 : vector<8x512xf32>
    %cst_17 = arith.constant 1.000000e+00 : f32
    %42 = vector.broadcast %cst_17 : f32 to vector<8x512xf32>
    %43 = arith.addf %42, %41 : vector<8x512xf32>
    %44 = arith.divf %42, %43 : vector<8x512xf32>
    %c0_18 = arith.constant 0 : index
    %c0_19 = arith.constant 0 : index
    %45 = vector.load %arg10[%c0_18, %c0_19] : memref<8x512xf32, #tpu.memory_space<vmem>>, vector<8x512xf32>
    %46 = arith.mulf %36, %45 : vector<8x512xf32>
    %47 = arith.mulf %30, %38 : vector<8x512xf32>
    %48 = arith.addf %46, %47 : vector<8x512xf32>
    %c0_20 = arith.constant 0 : index
    %c0_21 = arith.constant 0 : index
    %49 = vector.load %arg3[%c0_20, %c0_21] : memref<1x512xf32, #tpu.memory_space<vmem>>, vector<1x512xf32>
    %50 = vector.broadcast %49 : vector<1x512xf32> to vector<8x512xf32>
    %51 = arith.mulf %48, %50 : vector<8x512xf32>
    %52 = math.tanh %51 : vector<8x512xf32>
    %53 = arith.mulf %44, %52 : vector<8x512xf32>
    %c0_22 = arith.constant 0 : index
    %c0_23 = arith.constant 0 : index
    %54 = vector.load %arg11[%c0_22, %c0_23] : memref<8x512xf32, #tpu.memory_space<vmem>>, vector<8x512xf32>
    tpu.vector_store %arg11[%c0_22, %c0_23], %53 {strides = array<i32>} : memref<8x512xf32, #tpu.memory_space<vmem>>, vector<8x512xf32>,
    %c0_24 = arith.constant 0 : index
    %c0_25 = arith.constant 0 : index
    %55 = vector.load %arg12[%c0_24, %c0_25] : memref<8x512xf32, #tpu.memory_space<vmem>>, vector<8x512xf32>
    tpu.vector_store %arg12[%c0_24, %c0_25], %51 {strides = array<i32>} : memref<8x512xf32, #tpu.memory_space<vmem>>, vector<8x512xf32>,
    return
  }
  func.func @transform_0(%arg0: i32) -> (i32, i32) {
    %c0_i32 = arith.constant 0 : i32
    %c0_i32_0 = arith.constant 0 : i32
    %c0_i32_1 = arith.constant 0 : i32
    return %c0_i32, %c0_i32_0 : i32, i32
  }
  func.func @transform_1(%arg0: i32) -> (i32, i32) {
    %c0_i32 = arith.constant 0 : i32
    %c0_i32_0 = arith.constant 0 : i32
    %c0_i32_1 = arith.constant 0 : i32
    return %c0_i32, %c0_i32_0 : i32, i32
  }
  func.func @transform_2(%arg0: i32) -> (i32, i32) {
    %c0_i32 = arith.constant 0 : i32
    %c0_i32_0 = arith.constant 0 : i32
    return %c0_i32, %arg0 : i32, i32
  }
  func.func @transform_3(%arg0: i32) -> (i32, i32) {
    %c4_i32 = arith.constant 4 : i32
    %0 = arith.muli %arg0, %c4_i32 : i32
    %c1_i32 = arith.constant 1 : i32
    %1 = arith.subi %0, %c1_i32 : i32
    %c0_i32 = arith.constant 0 : i32
    %2 = arith.maxsi %1, %c0_i32 : i32
    %c0_i32_0 = arith.constant 0 : i32
    %c0_i32_1 = arith.constant 0 : i32
    return %c0_i32_0, %2 : i32, i32
  }
  func.func @transform_4(%arg0: i32) -> (i32, i32) {
    %c0_i32 = arith.constant 0 : i32
    %c0_i32_0 = arith.constant 0 : i32
    return %c0_i32, %arg0 : i32, i32
  }
  func.func @transform_5(%arg0: i32) -> (i32, i32) {
    %c1_i32 = arith.constant 1 : i32
    %0 = arith.addi %arg0, %c1_i32 : i32
    %c4_i32 = arith.constant 4 : i32
    %1 = arith.muli %0, %c4_i32 : i32
    %c7_i32 = arith.constant 7 : i32
    %2 = arith.minsi %1, %c7_i32 : i32
    %c0_i32 = arith.constant 0 : i32
    %c0_i32_0 = arith.constant 0 : i32
    return %c0_i32, %2 : i32, i32
  }
  func.func @transform_6(%arg0: i32) -> (i32, i32) {
    %c4_i32 = arith.constant 4 : i32
    %0 = arith.muli %arg0, %c4_i32 : i32
    %c1_i32 = arith.constant 1 : i32
    %1 = arith.subi %0, %c1_i32 : i32
    %c0_i32 = arith.constant 0 : i32
    %2 = arith.maxsi %1, %c0_i32 : i32
    %c0_i32_0 = arith.constant 0 : i32
    %c0_i32_1 = arith.constant 0 : i32
    return %c0_i32_0, %2 : i32, i32
  }
  func.func @transform_7(%arg0: i32) -> (i32, i32) {
    %c0_i32 = arith.constant 0 : i32
    %c0_i32_0 = arith.constant 0 : i32
    return %c0_i32, %arg0 : i32, i32
  }
  func.func @transform_8(%arg0: i32) -> (i32, i32) {
    %c1_i32 = arith.constant 1 : i32
    %0 = arith.addi %arg0, %c1_i32 : i32
    %c4_i32 = arith.constant 4 : i32
    %1 = arith.muli %0, %c4_i32 : i32
    %c7_i32 = arith.constant 7 : i32
    %2 = arith.minsi %1, %c7_i32 : i32
    %c0_i32 = arith.constant 0 : i32
    %c0_i32_0 = arith.constant 0 : i32
    return %c0_i32, %2 : i32, i32
  }
  func.func @transform_9(%arg0: i32) -> (i32, i32) {
    %c0_i32 = arith.constant 0 : i32
    %c0_i32_0 = arith.constant 0 : i32
    return %c0_i32, %arg0 : i32, i32
  }
  func.func @transform_10(%arg0: i32) -> (i32, i32) {
    %c0_i32 = arith.constant 0 : i32
    %c0_i32_0 = arith.constant 0 : i32
    return %c0_i32, %arg0 : i32, i32
  }
  func.func @transform_11(%arg0: i32) -> (i32, i32) {
    %c0_i32 = arith.constant 0 : i32
    %c0_i32_0 = arith.constant 0 : i32
    return %c0_i32, %arg0 : i32, i32
  }
}

</mosaic_0001>

<llo_original>
// kernel: conv_lstm_step.1
$region0: #{conv_lstm_step.1}
  #allocation0 [shape = 'u32[]', space=smem, size = 0x4, offset = 0x4, fixed_abs, tag = 'smem constant byte address 0x4 - core index']
  #allocation1 [shape = 'u32[144,128]{1,0:T(1,128)}', space=vmem, size = 0x12000, scoped, tag = 'internal scratch']
  %s0 = inlined_call_operand.vmem [shape: bf16[32,144], index: 0, kind: input, shape index: {}]
  %s1 = inlined_call_operand.vmem [shape: f32[32,1], index: 1, kind: input, shape index: {}]
  %s2 = inlined_call_operand.vmem [shape: f32[1,1024], index: 2, kind: input, shape index: {}]
  %s3 = inlined_call_operand.vmem [shape: bf16[8,1024], index: 3, kind: input, shape index: {}, may-alias: {3,4,5}]
  %s4 = inlined_call_operand.vmem [shape: bf16[8,1024], index: 4, kind: input, shape index: {}, may-alias: {3,4,5}]
  %s5 = inlined_call_operand.vmem [shape: bf16[8,1024], index: 5, kind: input, shape index: {}, may-alias: {3,4,5}]
  %s6 = inlined_call_operand.vmem [shape: f32[8,1024], index: 6, kind: input, shape index: {}, may-alias: {6,7,8}]
  %s7 = inlined_call_operand.vmem [shape: f32[8,1024], index: 7, kind: input, shape index: {}, may-alias: {6,7,8}]
  %s8 = inlined_call_operand.vmem [shape: f32[8,1024], index: 8, kind: input, shape index: {}, may-alias: {6,7,8}]
  %s9 = inlined_call_operand.vmem [shape: f32[8,1024], index: 9, kind: input, shape index: {}]
  %s10 = inlined_call_operand.vmem [shape: f32[8,1024], index: 10, kind: output, shape index: {0}]
  %s11 = inlined_call_operand.hbm [shape: f32[8,1024], index: 11, kind: output, shape index: {1}]
  %12 = xla_tuple %s10, %s11
  %s13 = sld [smem:[#allocation0]]
  $region81: #{conv_lstm_step.1} parent=0
    _
  %s15 = ssub.s32 1, %s13
  %s16 = scalar_select 0, %s15, %s13
  $region1: #{conv_lstm_step.1} parent=0
    #allocation2 [shape = 'u8[32768]{0}', space=vmem, size = 0x8000, scoped, tag = 'output window, operand 1']
    #allocation3 [shape = 's32[2]{0}', space=sflag, size = 0x8, scoped, tag = 'scoped memory for conv_lstm_step.1']
    %17 = vsyncpa [#allocation3], 0
    %s18 = scalar_lea.sflag [#allocation3], 1
    %19 = vsyncpa %s18, 0
    loop: start=0, step=1, limit=4
    $region2: #{conv_lstm_step.1} parent=1 // loop_pre_header
      _
    $region3: #{conv_lstm_step.1} parent=1 // loop_header
      %s21 = sphi 0, %s25
      %p22 = scmp.ge.s32.totalorder %s21, 4
      %s29 = sphi 0, %s29
      %s31 = sphi 0, %s29
      %s32 = sphi 0, %s31
      %s46 = sphi 0, %s32
      %s50 = sphi 0, %s50
      %s52 = sphi 0, %s50
      %s53 = sphi 0, %s52
      %s67 = sphi 0, %s53
      %s73 = sphi 0, %s75
      %s76 = sphi 0, %s73
      %s77 = sphi 0, %s76
      %s93 = sphi 0, %s77
      %s107 = sphi 0, %s109
      %s110 = sphi 0, %s107
      %s111 = sphi 0, %s110
      %s127 = sphi 0, %s111
      %s133 = sphi 0, %s135
      %s136 = sphi 0, %s133
      %s137 = sphi 0, %s136
      %s153 = sphi 0, %s137
      %s167 = sphi 0, %s169
      %s170 = sphi 0, %s167
      %s171 = sphi 0, %s170
      %s187 = sphi 0, %s171
      %s201 = sphi 0, %s203
      %s204 = sphi 0, %s201
      %s205 = sphi 0, %s204
      %s221 = sphi 0, %s205
      %s227 = sphi 0, %s229
      %s230 = sphi 0, %s227
      %s231 = sphi 0, %s230
      %s247 = sphi 0, %s231
      %s261 = sphi 0, %s263
      %s264 = sphi 0, %s261
      %s265 = sphi 0, %s264
      %s281 = sphi 0, %s265
      %s287 = sphi 0, %s289
      %s290 = sphi 0, %s287
      %s291 = sphi 0, %s290
      %s307 = sphi 0, %s291
      %s313 = sphi 0, %s315
      %s316 = sphi 0, %s313
      %s317 = sphi 0, %s316
      %s333 = sphi 0, %s317
      %s339 = sphi 0, %s341
      %s342 = sphi 0, %s339
      %s343 = sphi 0, %s342
      %s359 = sphi 0, %s343
    $region4: #{conv_lstm_step.1} parent=1 // loop_header_branch
      %24 = sbr.rel (%p22) target = $region8
    $region5: #{conv_lstm_step.1} parent=1 // loop_body
      %s26 = ssub.s32 %s21, 1
      %s27 = ssub.s32 %s21, 2
      %s28 = sadd.s32 %s21, 1
      %s30 = sadd.s32 %s29, 1
      %p33 = scmp.eq.s32.totalorder %s21, 1
      %p34 = scmp.ne.s32.totalorder %s29, %s31
      %p35 = scmp.eq.s32.totalorder %s21, 0
      %p36 = por %p34, %p35
      %p37 = scmp.ne.s32.totalorder %s29, %s31
      %p38 = scmp.eq.s32.totalorder %s26, 1
      %p39 = por %p37, %p38
      %p40 = scmp.ne.s32.totalorder %s31, %s32
      %p41 = scmp.eq.s32.totalorder %s26, 0
      %p42 = por %p40, %p41
      %p43 = scmp.ne.s32.totalorder %s31, %s32
      %p44 = scmp.eq.s32.totalorder %s27, 1
      %p45 = por %p43, %p44
      %p47 = scmp.ne.s32.totalorder %s32, %s46
      %p48 = scmp.eq.s32.totalorder %s27, 0
      %p49 = por %p47, %p48
      %s51 = sadd.s32 %s50, 1
      %p54 = scmp.eq.s32.totalorder %s21, 1
      %p55 = scmp.ne.s32.totalorder %s50, %s52
      %p56 = scmp.eq.s32.totalorder %s21, 0
      %p57 = por %p55, %p56
      %p58 = scmp.ne.s32.totalorder %s50, %s52
      %p59 = scmp.eq.s32.totalorder %s26, 1
      %p60 = por %p58, %p59
      %p61 = scmp.ne.s32.totalorder %s52, %s53
      %p62 = scmp.eq.s32.totalorder %s26, 0
      %p63 = por %p61, %p62
      %p64 = scmp.ne.s32.totalorder %s52, %s53
      %p65 = scmp.eq.s32.totalorder %s27, 1
      %p66 = por %p64, %p65
      %p68 = scmp.ne.s32.totalorder %s53, %s67
      %p69 = scmp.eq.s32.totalorder %s27, 0
      %p70 = por %p68, %p69
      %s71 = ssub.s32 %s21, %s28
      %p72 = scmp.eq.s32.totalorder %s71, 0
      %s74 = sadd.s32 %s73, 1
      %s75 = scalar_select %p72, %s73, %s74
      %p78 = pneg %p72
      %p79 = scmp.eq.s32.totalorder %s21, 1
      %p80 = por %p78, %p79
      %p81 = scmp.ne.s32.totalorder %s73, %s76
      %p82 = scmp.eq.s32.totalorder %s21, 0
      %p83 = por %p81, %p82
      %p84 = scmp.ne.s32.totalorder %s73, %s76
      %p85 = scmp.eq.s32.totalorder %s26, 1
      %p86 = por %p84, %p85
      %p87 = scmp.ne.s32.totalorder %s76, %s77
      %p88 = scmp.eq.s32.totalorder %s26, 0
      %p89 = por %p87, %p88
      %p90 = scmp.ne.s32.totalorder %s76, %s77
      %p91 = scmp.eq.s32.totalorder %s27, 1
      %p92 = por %p90, %p91
      %p94 = scmp.ne.s32.totalorder %s77, %s93
      %p95 = scmp.eq.s32.totalorder %s27, 0
      %p96 = por %p94, %p95
      %s97 = smul.u32 %s21, 4
      %s98 = ssub.s32 %s97, 1
      %p99 = scmp.gt.s32.totalorder %s98, 0
      %s100 = scalar_select %p99, %s98, 0
      %s101 = smul.u32 %s28, 4
      %s102 = ssub.s32 %s101, 1
      %p103 = scmp.gt.s32.totalorder %s102, 0
      %s104 = scalar_select %p103, %s102, 0
      %s105 = ssub.s32 %s100, %s104
      %p106 = scmp.eq.s32.totalorder %s105, 0
      %s108 = sadd.s32 %s107, 1
      %s109 = scalar_select %p106, %s107, %s108
      %p112 = pneg %p106
      %p113 = scmp.eq.s32.totalorder %s21, 1
      %p114 = por %p112, %p113
      %p115 = scmp.ne.s32.totalorder %s107, %s110
      %p116 = scmp.eq.s32.totalorder %s21, 0
      %p117 = por %p115, %p116
      %p118 = scmp.ne.s32.totalorder %s107, %s110
      %p119 = scmp.eq.s32.totalorder %s26, 1
      %p120 = por %p118, %p119
      %p121 = scmp.ne.s32.totalorder %s110, %s111
      %p122 = scmp.eq.s32.totalorder %s26, 0
      %p123 = por %p121, %p122
      %p124 = scmp.ne.s32.totalorder %s110, %s111
      %p125 = scmp.eq.s32.totalorder %s27, 1
      %p126 = por %p124, %p125
      %p128 = scmp.ne.s32.totalorder %s111, %s127
      %p129 = scmp.eq.s32.totalorder %s27, 0
      %p130 = por %p128, %p129
      %s131 = ssub.s32 %s21, %s28
      %p132 = scmp.eq.s32.totalorder %s131, 0
      %s134 = sadd.s32 %s133, 1
      %s135 = scalar_select %p132, %s133, %s134
      %p138 = pneg %p132
      %p139 = scmp.eq.s32.totalorder %s21, 1
      %p140 = por %p138, %p139
      %p141 = scmp.ne.s32.totalorder %s133, %s136
      %p142 = scmp.eq.s32.totalorder %s21, 0
      %p143 = por %p141, %p142
      %p144 = scmp.ne.s32.totalorder %s133, %s136
      %p145 = scmp.eq.s32.totalorder %s26, 1
      %p146 = por %p144, %p145
      %p147 = scmp.ne.s32.totalorder %s136, %s137
      %p148 = scmp.eq.s32.totalorder %s26, 0
      %p149 = por %p147, %p148
      %p150 = scmp.ne.s32.totalorder %s136, %s137
      %p151 = scmp.eq.s32.totalorder %s27, 1
      %p152 = por %p150, %p151
      %p154 = scmp.ne.s32.totalorder %s137, %s153
      %p155 = scmp.eq.s32.totalorder %s27, 0
      %p156 = por %p154, %p155
      %s157 = sadd.s32 %s21, 1
      %s158 = smul.u32 %s157, 4
      %p159 = scmp.lt.s32.totalorder %s158, 7
      %s160 = scalar_select %p159, %s158, 7
      %s161 = sadd.s32 %s28, 1
      %s162 = smul.u32 %s161, 4
      %p163 = scmp.lt.s32.totalorder %s162, 7
      %s164 = scalar_select %p163, %s162, 7
      %s165 = ssub.s32 %s160, %s164
      %p166 = scmp.eq.s32.totalorder %s165, 0
      %s168 = sadd.s32 %s167, 1
      %s169 = scalar_select %p166, %s167, %s168
      %p172 = pneg %p166
      %p173 = scmp.eq.s32.totalorder %s21, 1
      %p174 = por %p172, %p173
      %p175 = scmp.ne.s32.totalorder %s167, %s170
      %p176 = scmp.eq.s32.totalorder %s21, 0
      %p177 = por %p175, %p176
      %p178 = scmp.ne.s32.totalorder %s167, %s170
      %p179 = scmp.eq.s32.totalorder %s26, 1
      %p180 = por %p178, %p179
      %p181 = scmp.ne.s32.totalorder %s170, %s171
      %p182 = scmp.eq.s32.totalorder %s26, 0
      %p183 = por %p181, %p182
      %p184 = scmp.ne.s32.totalorder %s170, %s171
      %p185 = scmp.eq.s32.totalorder %s27, 1
      %p186 = por %p184, %p185
      %p188 = scmp.ne.s32.totalorder %s171, %s187
      %p189 = scmp.eq.s32.totalorder %s27, 0
      %p190 = por %p188, %p189
      %s191 = smul.u32 %s21, 4
      %s192 = ssub.s32 %s191, 1
      %p193 = scmp.gt.s32.totalorder %s192, 0
      %s194 = scalar_select %p193, %s192, 0
      %s195 = smul.u32 %s28, 4
      %s196 = ssub.s32 %s195, 1
      %p197 = scmp.gt.s32.totalorder %s196, 0
      %s198 = scalar_select %p197, %s196, 0
      %s199 = ssub.s32 %s194, %s198
      %p200 = scmp.eq.s32.totalorder %s199, 0
      %s202 = sadd.s32 %s201, 1
      %s203 = scalar_select %p200, %s201, %s202
      %p206 = pneg %p200
      %p207 = scmp.eq.s32.totalorder %s21, 1
      %p208 = por %p206, %p207
      %p209 = scmp.ne.s32.totalorder %s201, %s204
      %p210 = scmp.eq.s32.totalorder %s21, 0
      %p211 = por %p209, %p210
      %p212 = scmp.ne.s32.totalorder %s201, %s204
      %p213 = scmp.eq.s32.totalorder %s26, 1
      %p214 = por %p212, %p213
      %p215 = scmp.ne.s32.totalorder %s204, %s205
      %p216 = scmp.eq.s32.totalorder %s26, 0
      %p217 = por %p215, %p216
      %p218 = scmp.ne.s32.totalorder %s204, %s205
      %p219 = scmp.eq.s32.totalorder %s27, 1
      %p220 = por %p218, %p219
      %p222 = scmp.ne.s32.totalorder %s205, %s221
      %p223 = scmp.eq.s32.totalorder %s27, 0
      %p224 = por %p222, %p223
      %s225 = ssub.s32 %s21, %s28
      %p226 = scmp.eq.s32.totalorder %s225, 0
      %s228 = sadd.s32 %s227, 1
      %s229 = scalar_select %p226, %s227, %s228
      %p232 = pneg %p226
      %p233 = scmp.eq.s32.totalorder %s21, 1
      %p234 = por %p232, %p233
      %p235 = scmp.ne.s32.totalorder %s227, %s230
      %p236 = scmp.eq.s32.totalorder %s21, 0
      %p237 = por %p235, %p236
      %p238 = scmp.ne.s32.totalorder %s227, %s230
      %p239 = scmp.eq.s32.totalorder %s26, 1
      %p240 = por %p238, %p239
      %p241 = scmp.ne.s32.totalorder %s230, %s231
      %p242 = scmp.eq.s32.totalorder %s26, 0
      %p243 = por %p241, %p242
      %p244 = scmp.ne.s32.totalorder %s230, %s231
      %p245 = scmp.eq.s32.totalorder %s27, 1
      %p246 = por %p244, %p245
      %p248 = scmp.ne.s32.totalorder %s231, %s247
      %p249 = scmp.eq.s32.totalorder %s27, 0
      %p250 = por %p248, %p249
      %s251 = sadd.s32 %s21, 1
      %s252 = smul.u32 %s251, 4
      %p253 = scmp.lt.s32.totalorder %s252, 7
      %s254 = scalar_select %p253, %s252, 7
      %s255 = sadd.s32 %s28, 1
      %s256 = smul.u32 %s255, 4
      %p257 = scmp.lt.s32.totalorder %s256, 7
      %s258 = scalar_select %p257, %s256, 7
      %s259 = ssub.s32 %s254, %s258
      %p260 = scmp.eq.s32.totalorder %s259, 0
      %s262 = sadd.s32 %s261, 1
      %s263 = scalar_select %p260, %s261, %s262
      %p266 = pneg %p260
      %p267 = scmp.eq.s32.totalorder %s21, 1
      %p268 = por %p266, %p267
      %p269 = scmp.ne.s32.totalorder %s261, %s264
      %p270 = scmp.eq.s32.totalorder %s21, 0
      %p271 = por %p269, %p270
      %p272 = scmp.ne.s32.totalorder %s261, %s264
      %p273 = scmp.eq.s32.totalorder %s26, 1
      %p274 = por %p272, %p273
      %p275 = scmp.ne.s32.totalorder %s264, %s265
      %p276 = scmp.eq.s32.totalorder %s26, 0
      %p277 = por %p275, %p276
      %p278 = scmp.ne.s32.totalorder %s264, %s265
      %p279 = scmp.eq.s32.totalorder %s27, 1
      %p280 = por %p278, %p279
      %p282 = scmp.ne.s32.totalorder %s265, %s281
      %p283 = scmp.eq.s32.totalorder %s27, 0
      %p284 = por %p282, %p283
      %s285 = ssub.s32 %s21, %s28
      %p286 = scmp.eq.s32.totalorder %s285, 0
      %s288 = sadd.s32 %s287, 1
      %s289 = scalar_select %p286, %s287, %s288
      %p292 = pneg %p286
      %p293 = scmp.eq.s32.totalorder %s21, 1
      %p294 = por %p292, %p293
      %p295 = scmp.ne.s32.totalorder %s287, %s290
      %p296 = scmp.eq.s32.totalorder %s21, 0
      %p297 = por %p295, %p296
      %p298 = scmp.ne.s32.totalorder %s287, %s290
      %p299 = scmp.eq.s32.totalorder %s26, 1
      %p300 = por %p298, %p299
      %p301 = scmp.ne.s32.totalorder %s290, %s291
      %p302 = scmp.eq.s32.totalorder %s26, 0
      %p303 = por %p301, %p302
      %p304 = scmp.ne.s32.totalorder %s290, %s291
      %p305 = scmp.eq.s32.totalorder %s27, 1
      %p306 = por %p304, %p305
      %p308 = scmp.ne.s32.totalorder %s291, %s307
      %p309 = scmp.eq.s32.totalorder %s27, 0
      %p310 = por %p308, %p309
      %s311 = ssub.s32 %s21, %s28
      %p312 = scmp.eq.s32.totalorder %s311, 0
      %s314 = sadd.s32 %s313, 1
      %s315 = scalar_select %p312, %s313, %s314
      %p318 = pneg %p312
      %p319 = scmp.eq.s32.totalorder %s21, 1
      %p320 = por %p318, %p319
      %p321 = scmp.ne.s32.totalorder %s313, %s316
      %p322 = scmp.eq.s32.totalorder %s21, 0
      %p323 = por %p321, %p322
      %p324 = scmp.ne.s32.totalorder %s313, %s316
      %p325 = scmp.eq.s32.totalorder %s26, 1
      %p326 = por %p324, %p325
      %p327 = scmp.ne.s32.totalorder %s316, %s317
      %p328 = scmp.eq.s32.totalorder %s26, 0
      %p329 = por %p327, %p328
      %p330 = scmp.ne.s32.totalorder %s316, %s317
      %p331 = scmp.eq.s32.totalorder %s27, 1
      %p332 = por %p330, %p331
      %p334 = scmp.ne.s32.totalorder %s317, %s333
      %p335 = scmp.eq.s32.totalorder %s27, 0
      %p336 = por %p334, %p335
      %s337 = ssub.s32 %s21, %s28
      %p338 = scmp.eq.s32.totalorder %s337, 0
      %s340 = sadd.s32 %s339, 1
      %s341 = scalar_select %p338, %s339, %s340
      %p344 = pneg %p338
      %p345 = scmp.eq.s32.totalorder %s21, 1
      %p346 = por %p344, %p345
      %p347 = scmp.ne.s32.totalorder %s339, %s342
      %p348 = scmp.eq.s32.totalorder %s21, 0
      %p349 = por %p347, %p348
      %p350 = scmp.ne.s32.totalorder %s339, %s342
      %p351 = scmp.eq.s32.totalorder %s26, 1
      %p352 = por %p350, %p351
      %p353 = scmp.ne.s32.totalorder %s342, %s343
      %p354 = scmp.eq.s32.totalorder %s26, 0
      %p355 = por %p353, %p354
      %p356 = scmp.ne.s32.totalorder %s342, %s343
      %p357 = scmp.eq.s32.totalorder %s27, 1
      %p358 = por %p356, %p357
      %p360 = scmp.ne.s32.totalorder %s343, %s359
      %p361 = scmp.eq.s32.totalorder %s27, 0
      %p362 = por %p360, %p361
      %p363 = scmp.le.s32.totalorder 1, %s21
      %p364 = scmp.lt.s32.totalorder %s21, 3
      %p365 = pnand %p363, %p364
      %p366 = pneg %p365
      // Predicated region
      $region9: #{conv_lstm_step.1} parent=5 // pred_check
        _
      $region10: #{conv_lstm_step.1} parent=5 // pred_check_branch
        %368 = sbr.rel (%p365) target = $region12
      $region11: #{conv_lstm_step.1} parent=5 // pred_region
        %s369 = ssub.s32 %s21, 1
        // Predicated region
        $region13: #{conv_lstm_step.1} parent=11 // pred_check
          %p370 = pneg %p42
        $region14: #{conv_lstm_step.1} parent=11 // pred_check_branch
          %372 = sbr.rel (%p370) target = $region16
        $region15: #{conv_lstm_step.1} parent=11 // pred_region
          _
        $region16: #{conv_lstm_step.1} parent=11 // pred_fallthru
          _
        // Predicated region
        $region17: #{conv_lstm_step.1} parent=11 // pred_check
          %p373 = pneg %p63
        $region18: #{conv_lstm_step.1} parent=11 // pred_check_branch
          %375 = sbr.rel (%p373) target = $region20
        $region19: #{conv_lstm_step.1} parent=11 // pred_region
          _
        $region20: #{conv_lstm_step.1} parent=11 // pred_fallthru
          _
      $region12: #{conv_lstm_step.1} parent=5 // pred_fallthru
        _
      %p376 = scmp.lt.s32.totalorder %s21, 2
      // Predicated region
      $region21: #{conv_lstm_step.1} parent=5 // pred_check
        %p377 = pneg %p376
      $region22: #{conv_lstm_step.1} parent=5 // pred_check_branch
        %379 = sbr.rel (%p377) target = $region24
      $region23: #{conv_lstm_step.1} parent=5 // pred_region
        // Predicated region
        $region25: #{conv_lstm_step.1} parent=23 // pred_check
          %p380 = pneg %p83
        $region26: #{conv_lstm_step.1} parent=23 // pred_check_branch
          %382 = sbr.rel (%p380) target = $region28
        $region27: #{conv_lstm_step.1} parent=23 // pred_region
          %s383 = smul.u32 4, %s21
          %p384 = scmp.lt.s32.totalorder %s383, 7
          %s385 = scalar_select %p384, %s383, 7
          %s386 = scalar_lea.vmem %s2, %s385
          %s387 = smul.u32 4, %s21
        $region28: #{conv_lstm_step.1} parent=23 // pred_fallthru
          _
        // Predicated region
        $region29: #{conv_lstm_step.1} parent=23 // pred_check
          %p388 = pneg %p117
        $region30: #{conv_lstm_step.1} parent=23 // pred_check_branch
          %390 = sbr.rel (%p388) target = $region32
        $region31: #{conv_lstm_step.1} parent=23 // pred_region
          %s391 = smul.u32 %s21, 4
          %s392 = ssub.s32 %s391, 1
          %p393 = scmp.gt.s32.totalorder %s392, 0
          %s394 = scalar_select %p393, %s392, 0
          %p395 = scmp.lt.s32.totalorder %s394, 7
          %s396 = scalar_select %p395, %s394, 7
          %s397 = smul.addr %s396, 4
          %s398 = scalar_lea.vmem %s3, %s397
          %s399 = smul.u32 %s21, 4
          %s400 = ssub.s32 %s399, 1
          %p401 = scmp.gt.s32.totalorder %s400, 0
          %s402 = scalar_select %p401, %s400, 0
        $region32: #{conv_lstm_step.1} parent=23 // pred_fallthru
          _
        // Predicated region
        $region33: #{conv_lstm_step.1} parent=23 // pred_check
          %p403 = pneg %p143
        $region34: #{conv_lstm_step.1} parent=23 // pred_check_branch
          %405 = sbr.rel (%p403) target = $region36
        $region35: #{conv_lstm_step.1} parent=23 // pred_region
          %s406 = smul.u32 4, %s21
          %p407 = scmp.lt.s32.totalorder %s406, 7
          %s408 = scalar_select %p407, %s406, 7
          %s409 = smul.addr %s408, 4
          %s410 = scalar_lea.vmem %s4, %s409
          %s411 = smul.u32 4, %s21
        $region36: #{conv_lstm_step.1} parent=23 // pred_fallthru
          _
        // Predicated region
        $region37: #{conv_lstm_step.1} parent=23 // pred_check
          %p412 = pneg %p177
        $region38: #{conv_lstm_step.1} parent=23 // pred_check_branch
          %414 = sbr.rel (%p412) target = $region40
        $region39: #{conv_lstm_step.1} parent=23 // pred_region
          %s415 = sadd.s32 %s21, 1
          %s416 = smul.u32 %s415, 4
          %p417 = scmp.lt.s32.totalorder %s416, 7
          %s418 = scalar_select %p417, %s416, 7
          %p419 = scmp.lt.s32.totalorder %s418, 7
          %s420 = scalar_select %p419, %s418, 7
          %s421 = smul.addr %s420, 4
          %s422 = scalar_lea.vmem %s5, %s421
          %s423 = sadd.s32 %s21, 1
          %s424 = smul.u32 %s423, 4
          %p425 = scmp.lt.s32.totalorder %s424, 7
          %s426 = scalar_select %p425, %s424, 7
        $region40: #{conv_lstm_step.1} parent=23 // pred_fallthru
          _
        // Predicated region
        $region41: #{conv_lstm_step.1} parent=23 // pred_check
          %p427 = pneg %p211
        $region42: #{conv_lstm_step.1} parent=23 // pred_check_branch
          %429 = sbr.rel (%p427) target = $region44
        $region43: #{conv_lstm_step.1} parent=23 // pred_region
          %s430 = smul.u32 %s21, 4
          %s431 = ssub.s32 %s430, 1
          %p432 = scmp.gt.s32.totalorder %s431, 0
          %s433 = scalar_select %p432, %s431, 0
          %p434 = scmp.lt.s32.totalorder %s433, 7
          %s435 = scalar_select %p434, %s433, 7
          %s436 = smul.addr %s435, 8
          %s437 = scalar_lea.vmem %s6, %s436
          %s438 = smul.u32 %s21, 4
          %s439 = ssub.s32 %s438, 1
          %p440 = scmp.gt.s32.totalorder %s439, 0
          %s441 = scalar_select %p440, %s439, 0
        $region44: #{conv_lstm_step.1} parent=23 // pred_fallthru
          _
        // Predicated region
        $region45: #{conv_lstm_step.1} parent=23 // pred_check
          %p442 = pneg %p237
        $region46: #{conv_lstm_step.1} parent=23 // pred_check_branch
          %444 = sbr.rel (%p442) target = $region48
        $region47: #{conv_lstm_step.1} parent=23 // pred_region
          %s445 = smul.u32 4, %s21
          %p446 = scmp.lt.s32.totalorder %s445, 7
          %s447 = scalar_select %p446, %s445, 7
          %s448 = smul.addr %s447, 8
          %s449 = scalar_lea.vmem %s7, %s448
          %s450 = smul.u32 4, %s21
        $region48: #{conv_lstm_step.1} parent=23 // pred_fallthru
          _
        // Predicated region
        $region49: #{conv_lstm_step.1} parent=23 // pred_check
          %p451 = pneg %p271
        $region50: #{conv_lstm_step.1} parent=23 // pred_check_branch
          %453 = sbr.rel (%p451) target = $region52
        $region51: #{conv_lstm_step.1} parent=23 // pred_region
          %s454 = sadd.s32 %s21, 1
          %s455 = smul.u32 %s454, 4
          %p456 = scmp.lt.s32.totalorder %s455, 7
          %s457 = scalar_select %p456, %s455, 7
          %p458 = scmp.lt.s32.totalorder %s457, 7
          %s459 = scalar_select %p458, %s457, 7
          %s460 = smul.addr %s459, 8
          %s461 = scalar_lea.vmem %s8, %s460
          %s462 = sadd.s32 %s21, 1
          %s463 = smul.u32 %s462, 4
          %p464 = scmp.lt.s32.totalorder %s463, 7
          %s465 = scalar_select %p464, %s463, 7
        $region52: #{conv_lstm_step.1} parent=23 // pred_fallthru
          _
        // Predicated region
        $region53: #{conv_lstm_step.1} parent=23 // pred_check
          %p466 = pneg %p297
        $region54: #{conv_lstm_step.1} parent=23 // pred_check_branch
          %468 = sbr.rel (%p466) target = $region56
        $region55: #{conv_lstm_step.1} parent=23 // pred_region
          %s469 = smul.u32 4, %s21
          %p470 = scmp.lt.s32.totalorder %s469, 7
          %s471 = scalar_select %p470, %s469, 7
          %s472 = smul.addr %s471, 8
          %s473 = scalar_lea.vmem %s9, %s472
          %s474 = smul.u32 4, %s21
        $region56: #{conv_lstm_step.1} parent=23 // pred_fallthru
          _
      $region24: #{conv_lstm_step.1} parent=5 // pred_fallthru
        _
      %p475 = scmp.le.s32.totalorder 1, %s21
      %p476 = scmp.lt.s32.totalorder %s21, 3
      %p477 = pnand %p475, %p476
      %p478 = pneg %p477
      // Predicated region
      $region57: #{conv_lstm_step.1} parent=5 // pred_check
        _
      $region58: #{conv_lstm_step.1} parent=5 // pred_check_branch
        %480 = sbr.rel (%p477) target = $region60
      $region59: #{conv_lstm_step.1} parent=5 // pred_region
        %s481 = ssub.s32 %s21, 1
        %p482 = pneg %p42
        %p483 = pneg %p39
        %p484 = pneg %p63
        %p485 = pneg %p60
        %s486 = smul.u32 4, %s26
        %p487 = scmp.lt.s32.totalorder %s486, 7
        %s488 = scalar_select %p487, %s486, 7
        %s489 = scalar_lea.vmem %s2, %s488
        %p490 = pneg %p89
        %p491 = pneg %p86
        %s492 = smul.u32 %s26, 4
        %s493 = ssub.s32 %s492, 1
        %p494 = scmp.gt.s32.totalorder %s493, 0
        %s495 = scalar_select %p494, %s493, 0
        %p496 = scmp.lt.s32.totalorder %s495, 7
        %s497 = scalar_select %p496, %s495, 7
        %s498 = smul.addr %s497, 4
        %s499 = scalar_lea.vmem %s3, %s498
        %p500 = pneg %p123
        %p501 = pneg %p120
        %s502 = smul.u32 4, %s26
        %p503 = scmp.lt.s32.totalorder %s502, 7
        %s504 = scalar_select %p503, %s502, 7
        %s505 = smul.addr %s504, 4
        %s506 = scalar_lea.vmem %s4, %s505
        %p507 = pneg %p149
        %p508 = pneg %p146
        %s509 = sadd.s32 %s26, 1
        %s510 = smul.u32 %s509, 4
        %p511 = scmp.lt.s32.totalorder %s510, 7
        %s512 = scalar_select %p511, %s510, 7
        %p513 = scmp.lt.s32.totalorder %s512, 7
        %s514 = scalar_select %p513, %s512, 7
        %s515 = smul.addr %s514, 4
        %s516 = scalar_lea.vmem %s5, %s515
        %p517 = pneg %p183
        %p518 = pneg %p180
        %s519 = smul.u32 %s26, 4
        %s520 = ssub.s32 %s519, 1
        %p521 = scmp.gt.s32.totalorder %s520, 0
        %s522 = scalar_select %p521, %s520, 0
        %p523 = scmp.lt.s32.totalorder %s522, 7
        %s524 = scalar_select %p523, %s522, 7
        %s525 = smul.addr %s524, 8
        %s526 = scalar_lea.vmem %s6, %s525
        %p527 = pneg %p217
        %p528 = pneg %p214
        %s529 = smul.u32 4, %s26
        %p530 = scmp.lt.s32.totalorder %s529, 7
        %s531 = scalar_select %p530, %s529, 7
        %s532 = smul.addr %s531, 8
        %s533 = scalar_lea.vmem %s7, %s532
        %p534 = pneg %p243
        %p535 = pneg %p240
        %s536 = sadd.s32 %s26, 1
        %s537 = smul.u32 %s536, 4
        %p538 = scmp.lt.s32.totalorder %s537, 7
        %s539 = scalar_select %p538, %s537, 7
        %p540 = scmp.lt.s32.totalorder %s539, 7
        %s541 = scalar_select %p540, %s539, 7
        %s542 = smul.addr %s541, 8
        %s543 = scalar_lea.vmem %s8, %s542
        %p544 = pneg %p277
        %p545 = pneg %p274
        %s546 = smul.u32 4, %s26
        %p547 = scmp.lt.s32.totalorder %s546, 7
        %s548 = scalar_select %p547, %s546, 7
        %s549 = smul.addr %s548, 8
        %s550 = scalar_lea.vmem %s9, %s549
        %p551 = pneg %p303
        %p552 = pneg %p300
        %p553 = pneg %p329
        %p554 = pneg %p326
        %s555 = smul.u32 4, %s26
        %p556 = scmp.lt.s32.totalorder %s555, 7
        %s557 = scalar_select %p556, %s555, 7
        %s558 = smul.addr %s557, 8
        %s559 = scalar_lea.vmem %s10, %s558
        %p560 = pneg %p355
        %p561 = pneg %p352
        %s562 = sand.u32 %s342, 1
        %s563 = scalar_lea.sflag [#allocation3], %s562
        %s564 = sand.u32 %s342, 1
        %s565 = smul.addr %s564, 32
        %s566 = scalar_lea.vmem [#allocation2], %s565
        %s567 = smul.u32 4, %s26
        %p568 = scmp.lt.s32.totalorder %s567, 7
        %s569 = scalar_select %p568, %s567, 7
        %s570 = scalar_lea.vmem %s2, %s569
        %s571 = smul.u32 4, %s26
        %s572 = smul.u32 %s26, 4
        %s573 = ssub.s32 %s572, 1
        %p574 = scmp.gt.s32.totalorder %s573, 0
        %s575 = scalar_select %p574, %s573, 0
        %p576 = scmp.lt.s32.totalorder %s575, 7
        %s577 = scalar_select %p576, %s575, 7
        %s578 = smul.addr %s577, 4
        %s579 = scalar_lea.vmem %s3, %s578
        %s580 = smul.u32 %s26, 4
        %s581 = ssub.s32 %s580, 1
        %p582 = scmp.gt.s32.totalorder %s581, 0
        %s583 = scalar_select %p582, %s581, 0
        %s584 = smul.u32 4, %s26
        %p585 = scmp.lt.s32.totalorder %s584, 7
        %s586 = scalar_select %p585, %s584, 7
        %s587 = smul.addr %s586, 4
        %s588 = scalar_lea.vmem %s4, %s587
        %s589 = smul.u32 4, %s26
        %s590 = sadd.s32 %s26, 1
        %s591 = smul.u32 %s590, 4
        %p592 = scmp.lt.s32.totalorder %s591, 7
        %s593 = scalar_select %p592, %s591, 7
        %p594 = scmp.lt.s32.totalorder %s593, 7
        %s595 = scalar_select %p594, %s593, 7
        %s596 = smul.addr %s595, 4
        %s597 = scalar_lea.vmem %s5, %s596
        %s598 = sadd.s32 %s26, 1
        %s599 = smul.u32 %s598, 4
        %p600 = scmp.lt.s32.totalorder %s599, 7
        %s601 = scalar_select %p600, %s599, 7
        %s602 = smul.u32 %s26, 4
        %s603 = ssub.s32 %s602, 1
        %p604 = scmp.gt.s32.totalorder %s603, 0
        %s605 = scalar_select %p604, %s603, 0
        %p606 = scmp.lt.s32.totalorder %s605, 7
        %s607 = scalar_select %p606, %s605, 7
        %s608 = smul.addr %s607, 8
        %s609 = scalar_lea.vmem %s6, %s608
        %s610 = smul.u32 %s26, 4
        %s611 = ssub.s32 %s610, 1
        %p612 = scmp.gt.s32.totalorder %s611, 0
        %s613 = scalar_select %p612, %s611, 0
        %s614 = smul.u32 4, %s26
        %p615 = scmp.lt.s32.totalorder %s614, 7
        %s616 = scalar_select %p615, %s614, 7
        %s617 = smul.addr %s616, 8
        %s618 = scalar_lea.vmem %s7, %s617
        %s619 = smul.u32 4, %s26
        %s620 = sadd.s32 %s26, 1
        %s621 = smul.u32 %s620, 4
        %p622 = scmp.lt.s32.totalorder %s621, 7
        %s623 = scalar_select %p622, %s621, 7
        %p624 = scmp.lt.s32.totalorder %s623, 7
        %s625 = scalar_select %p624, %s623, 7
        %s626 = smul.addr %s625, 8
        %s627 = scalar_lea.vmem %s8, %s626
        %s628 = sadd.s32 %s26, 1
        %s629 = smul.u32 %s628, 4
        %p630 = scmp.lt.s32.totalorder %s629, 7
        %s631 = scalar_select %p630, %s629, 7
        %s632 = smul.u32 4, %s26
        %p633 = scmp.lt.s32.totalorder %s632, 7
        %s634 = scalar_select %p633, %s632, 7
        %s635 = smul.addr %s634, 8
        %s636 = scalar_lea.vmem %s9, %s635
        %s637 = smul.u32 4, %s26
        %s638 = smul.u32 4, %s26
        %p639 = scmp.lt.s32.totalorder %s638, 7
        %s640 = scalar_select %p639, %s638, 7
        %s641 = smul.addr %s640, 8
        %s642 = scalar_lea.vmem %s10, %s641
        %s643 = smul.u32 4, %s26
        %s644 = smul.u32 4, %s26
        %v646 = vld [vmem:[%s579] sm:$0xf]
        %v647 = vld [vmem:[%s588] sm:$0xff]
        %v648 = vld [vmem:[%s588 + $0x8] sm:$0xff]
        %v649 = vld [vmem:[%s597] sm:$0xf]
        %v652 = vunpack.c.l.b16 %v647
        %v653 = vunpack.c.h.b16 %v647
        %v654 = vunpack.c.l.b16 %v648
        %v655 = vunpack.c.h.b16 %v648
        %v656 = vpack.c.b16 %v652, %v652
        %v657 = vpack.c.b16 %v653, %v653
        %v658 = vpack.c.b16 %v654, %v654
        %v659 = vpack.c.b16 %v655, %v655
        %v660 = vld [vmem:[%s609] sm:$0xff]
        %v661 = vld [vmem:[%s618] sm:$0xff]
        %v662 = vld [vmem:[%s618 + $0x8] sm:$0xff]
        %v663 = vld [vmem:[%s618 + $0x10] sm:$0xff]
        %v664 = vld [vmem:[%s618 + $0x18] sm:$0xff]
        %v665 = vld [vmem:[%s627] sm:$0xff]
        %v666 = vpack.c.bf16 %v660, %v660
        %v667 = vpack.c.bf16 %v661, %v661
        %v668 = vpack.c.bf16 %v662, %v662
        %v669 = vpack.c.bf16 %v663, %v663
        %v670 = vpack.c.bf16 %v664, %v664
        %v671 = vpack.c.bf16 %v665, %v665
        %v678 = vrot.slane %v666, 4
        %v679 = vrot.slane %v667, 4
        %v680 = vrot.slane %v668, 4
        %v681 = vrot.slane %v669, 4
        %v682 = vrot.slane %v670, 4
        %v683 = vrot.slane %v671, 4
        %vm684 = vcmask 1043456
        %v687 = vsel %vm684, %v646, %v678
        %v690 = vsel %vm684, %v656, %v679
        %v693 = vsel %vm684, %v657, %v680
        %v696 = vsel %vm684, %v658, %v681
        %v699 = vsel %vm684, %v659, %v682
        %v702 = vsel %vm684, %v649, %v683
        %708 = vrot.lane.b32.xlu0 %v687, 127
        %v709 = vpop.permute.xlu0 %708
        %710 = vrot.lane.b32.xlu0 %v690, 127
        %v711 = vpop.permute.xlu0 %710
        %712 = vrot.lane.b32.xlu0 %v693, 127
        %v713 = vpop.permute.xlu0 %712
        %714 = vrot.lane.b32.xlu0 %v696, 127
        %v715 = vpop.permute.xlu0 %714
        %716 = vrot.lane.b32.xlu0 %v699, 127
        %v717 = vpop.permute.xlu0 %716
        %vm718 = vcmask 1039360
        %v719 = vsel %vm718, %v709, %v711
        %v720 = vsel %vm718, %v711, %v713
        %v721 = vsel %vm718, %v713, %v715
        %v722 = vsel %vm718, %v715, %v717
        %723 = vrot.lane.b32.xlu0 %v687, 126
        %v724 = vpop.permute.xlu0 %723
        %725 = vrot.lane.b32.xlu0 %v690, 126
        %v726 = vpop.permute.xlu0 %725
        %727 = vrot.lane.b32.xlu0 %v693, 126
        %v728 = vpop.permute.xlu0 %727
        %729 = vrot.lane.b32.xlu0 %v696, 126
        %v730 = vpop.permute.xlu0 %729
        %731 = vrot.lane.b32.xlu0 %v699, 126
        %v732 = vpop.permute.xlu0 %731
        %vm733 = vcmask 1031168
        %v734 = vsel %vm733, %v724, %v726
        %v735 = vsel %vm733, %v726, %v728
        %v736 = vsel %vm733, %v728, %v730
        %v737 = vsel %vm733, %v730, %v732
        %738 = vrot.lane.b32.xlu0 %v687, 110
        %v739 = vpop.permute.xlu0 %738
        %740 = vrot.lane.b32.xlu0 %v690, 110
        %v741 = vpop.permute.xlu0 %740
        %742 = vrot.lane.b32.xlu0 %v693, 110
        %v743 = vpop.permute.xlu0 %742
        %744 = vrot.lane.b32.xlu0 %v696, 110
        %v745 = vpop.permute.xlu0 %744
        %746 = vrot.lane.b32.xlu0 %v699, 110
        %v747 = vpop.permute.xlu0 %746
        %vm748 = vcmask 900096
        %v749 = vsel %vm748, %v739, %v741
        %v750 = vsel %vm748, %v741, %v743
        %v751 = vsel %vm748, %v743, %v745
        %v752 = vsel %vm748, %v745, %v747
        %753 = vrot.lane.b32.xlu0 %v690, 109
        %v754 = vpop.permute.xlu0 %753
        %755 = vrot.lane.b32.xlu0 %v693, 109
        %v756 = vpop.permute.xlu0 %755
        %757 = vrot.lane.b32.xlu0 %v696, 109
        %v758 = vpop.permute.xlu0 %757
        %759 = vrot.lane.b32.xlu0 %v699, 109
        %v760 = vpop.permute.xlu0 %759
        %vm761 = vcmask 891904
        %v762 = vsel %vm761, %v754, %v756
        %v763 = vsel %vm761, %v756, %v758
        %v764 = vsel %vm761, %v758, %v760
        %766 = vrot.lane.b32.xlu0 %v690, 108
        %v767 = vpop.permute.xlu0 %766
        %768 = vrot.lane.b32.xlu0 %v693, 108
        %v769 = vpop.permute.xlu0 %768
        %770 = vrot.lane.b32.xlu0 %v696, 108
        %v771 = vpop.permute.xlu0 %770
        %772 = vrot.lane.b32.xlu0 %v699, 108
        %v773 = vpop.permute.xlu0 %772
        %774 = vrot.lane.b32.xlu0 %v702, 108
        %v775 = vpop.permute.xlu0 %774
        %vm776 = vcmask 883712
        %v777 = vsel %vm776, %v767, %v769
        %v778 = vsel %vm776, %v769, %v771
        %v779 = vsel %vm776, %v771, %v773
        %v780 = vsel %vm776, %v773, %v775
        %781 = vrot.lane.b32.xlu0 %v690, 92
        %v782 = vpop.permute.xlu0 %781
        %783 = vrot.lane.b32.xlu0 %v693, 92
        %v784 = vpop.permute.xlu0 %783
        %785 = vrot.lane.b32.xlu0 %v696, 92
        %v786 = vpop.permute.xlu0 %785
        %787 = vrot.lane.b32.xlu0 %v699, 92
        %v788 = vpop.permute.xlu0 %787
        %789 = vrot.lane.b32.xlu0 %v702, 92
        %v790 = vpop.permute.xlu0 %789
        %vm791 = vcmask 752640
        %v792 = vsel %vm791, %v782, %v784
        %v793 = vsel %vm791, %v784, %v786
        %v794 = vsel %vm791, %v786, %v788
        %v795 = vsel %vm791, %v788, %v790
        %796 = vrot.lane.b32.xlu0 %v690, 91
        %v797 = vpop.permute.xlu0 %796
        %798 = vrot.lane.b32.xlu0 %v693, 91
        %v799 = vpop.permute.xlu0 %798
        %800 = vrot.lane.b32.xlu0 %v696, 91
        %v801 = vpop.permute.xlu0 %800
        %802 = vrot.lane.b32.xlu0 %v699, 91
        %v803 = vpop.permute.xlu0 %802
        %804 = vrot.lane.b32.xlu0 %v702, 91
        %v805 = vpop.permute.xlu0 %804
        %vm806 = vcmask 744448
        %v807 = vsel %vm806, %v797, %v799
        %v808 = vsel %vm806, %v799, %v801
        %v809 = vsel %vm806, %v801, %v803
        %v810 = vsel %vm806, %v803, %v805
        %811 = vrot.lane.b32.xlu0 %v690, 90
        %v812 = vpop.permute.xlu0 %811
        %813 = vrot.lane.b32.xlu0 %v693, 90
        %v814 = vpop.permute.xlu0 %813
        %815 = vrot.lane.b32.xlu0 %v696, 90
        %v816 = vpop.permute.xlu0 %815
        %817 = vrot.lane.b32.xlu0 %v699, 90
        %v818 = vpop.permute.xlu0 %817
        %819 = vrot.lane.b32.xlu0 %v702, 90
        %v820 = vpop.permute.xlu0 %819
        %vm821 = vcmask 736256
        %v822 = vsel %vm821, %v812, %v814
        %v823 = vsel %vm821, %v814, %v816
        %v824 = vsel %vm821, %v816, %v818
        %v825 = vsel %vm821, %v818, %v820
        %v826 = vld [vmem:[%s0] sm:$0xff]
        %v827 = vld [vmem:[%s0 + $0x8] sm:$0xff]
        %v828 = vld [vmem:[%s0 + $0x10] sm:$0xff]
        %v829 = vld [vmem:[%s0 + $0x18] sm:$0xff]
        %v830 = vld [vmem:[%s1] sm:$0xff]
        %v831 = vld [vmem:[%s1 + $0x8] sm:$0xff]
        %v832 = vld [vmem:[%s1 + $0x10] sm:$0xff]
        %v833 = vld [vmem:[%s1 + $0x18] sm:$0xff]
        %835 = vset.pattern.permute.xlu0 0
        %836 = vperm.xlu0 %835, %v830
        %v837 = vpop.permute.xlu0 %836
        %840 = vset.pattern.permute.xlu0 0
        %841 = vperm.xlu0 %840, %v831
        %v842 = vpop.permute.xlu0 %841
        %845 = vset.pattern.permute.xlu0 0
        %846 = vperm.xlu0 %845, %v832
        %v847 = vpop.permute.xlu0 %846
        %850 = vset.pattern.permute.xlu0 0
        %851 = vperm.xlu0 %850, %v833
        %v852 = vpop.permute.xlu0 %851
        %v858 = vunpack.c.l.b16 %v826
        %v859 = vunpack.c.h.b16 %v826
        %v860 = vunpack.c.l.b16 %v827
        %v861 = vunpack.c.h.b16 %v827
        %v862 = vunpack.c.l.b16 %v828
        %v863 = vunpack.c.h.b16 %v828
        %v864 = vunpack.c.l.b16 %v829
        %v865 = vunpack.c.h.b16 %v829
        %v866 = vpack.c.b16 %v860, %v858
        %v867 = vpack.c.b16 %v861, %v859
        %v868 = vpack.c.b16 %v864, %v862
        %v869 = vpack.c.b16 %v865, %v863
        %872 = vrot.lane.b32.xlu0 %v687, 19
        %v873 = vpop.permute.xlu0 %872
        %874 = vrot.lane.b32.xlu0 %v690, 19
        %v875 = vpop.permute.xlu0 %874
        %876 = vrot.lane.b32.xlu0 %v693, 19
        %v877 = vpop.permute.xlu0 %876
        %878 = vrot.lane.b32.xlu0 %v696, 19
        %v879 = vpop.permute.xlu0 %878
        %880 = vrot.lane.b32.xlu0 %v699, 19
        %v881 = vpop.permute.xlu0 %880
        %882 = vrot.lane.b32.xlu0 %v719, 19
        %v883 = vpop.permute.xlu0 %882
        %884 = vrot.lane.b32.xlu0 %v720, 19
        %v885 = vpop.permute.xlu0 %884
        %886 = vrot.lane.b32.xlu0 %v721, 19
        %v887 = vpop.permute.xlu0 %886
        %888 = vrot.lane.b32.xlu0 %v722, 19
        %v889 = vpop.permute.xlu0 %888
        %890 = vrot.lane.b32.xlu0 %v717, 19
        %v891 = vpop.permute.xlu0 %890
        %892 = vrot.lane.b32.xlu0 %v734, 19
        %v893 = vpop.permute.xlu0 %892
        %894 = vrot.lane.b32.xlu0 %v735, 19
        %v895 = vpop.permute.xlu0 %894
        %896 = vrot.lane.b32.xlu0 %v736, 19
        %v897 = vpop.permute.xlu0 %896
        %898 = vrot.lane.b32.xlu0 %v737, 19
        %v899 = vpop.permute.xlu0 %898
        %900 = vrot.lane.b32.xlu0 %v732, 19
        %v901 = vpop.permute.xlu0 %900
        %902 = vrot.lane.b32.xlu0 %v749, 19
        %v903 = vpop.permute.xlu0 %902
        %904 = vrot.lane.b32.xlu0 %v750, 19
        %v905 = vpop.permute.xlu0 %904
        %906 = vrot.lane.b32.xlu0 %v751, 19
        %v907 = vpop.permute.xlu0 %906
        %908 = vrot.lane.b32.xlu0 %v752, 19
        %v909 = vpop.permute.xlu0 %908
        %910 = vrot.lane.b32.xlu0 %v747, 19
        %v911 = vpop.permute.xlu0 %910
        %912 = vrot.lane.b32.xlu0 %v754, 19
        %v913 = vpop.permute.xlu0 %912
        %914 = vrot.lane.b32.xlu0 %v762, 19
        %v915 = vpop.permute.xlu0 %914
        %916 = vrot.lane.b32.xlu0 %v763, 19
        %v917 = vpop.permute.xlu0 %916
        %918 = vrot.lane.b32.xlu0 %v764, 19
        %v919 = vpop.permute.xlu0 %918
        %920 = vrot.lane.b32.xlu0 %v760, 19
        %v921 = vpop.permute.xlu0 %920
        %922 = vrot.lane.b32.xlu0 %v767, 19
        %v923 = vpop.permute.xlu0 %922
        %924 = vrot.lane.b32.xlu0 %v777, 19
        %v925 = vpop.permute.xlu0 %924
        %926 = vrot.lane.b32.xlu0 %v778, 19
        %v927 = vpop.permute.xlu0 %926
        %928 = vrot.lane.b32.xlu0 %v779, 19
        %v929 = vpop.permute.xlu0 %928
        %930 = vrot.lane.b32.xlu0 %v780, 19
        %v931 = vpop.permute.xlu0 %930
        %932 = vrot.lane.b32.xlu0 %v782, 19
        %v933 = vpop.permute.xlu0 %932
        %934 = vrot.lane.b32.xlu0 %v792, 19
        %v935 = vpop.permute.xlu0 %934
        %936 = vrot.lane.b32.xlu0 %v793, 19
        %v937 = vpop.permute.xlu0 %936
        %938 = vrot.lane.b32.xlu0 %v794, 19
        %v939 = vpop.permute.xlu0 %938
        %940 = vrot.lane.b32.xlu0 %v795, 19
        %v941 = vpop.permute.xlu0 %940
        %942 = vrot.lane.b32.xlu0 %v797, 19
        %v943 = vpop.permute.xlu0 %942
        %944 = vrot.lane.b32.xlu0 %v807, 19
        %v945 = vpop.permute.xlu0 %944
        %946 = vrot.lane.b32.xlu0 %v808, 19
        %v947 = vpop.permute.xlu0 %946
        %948 = vrot.lane.b32.xlu0 %v809, 19
        %v949 = vpop.permute.xlu0 %948
        %950 = vrot.lane.b32.xlu0 %v810, 19
        %v951 = vpop.permute.xlu0 %950
        %952 = vrot.lane.b32.xlu0 %v812, 19
        %v953 = vpop.permute.xlu0 %952
        %954 = vrot.lane.b32.xlu0 %v822, 19
        %v955 = vpop.permute.xlu0 %954
        %956 = vrot.lane.b32.xlu0 %v823, 19
        %v957 = vpop.permute.xlu0 %956
        %958 = vrot.lane.b32.xlu0 %v824, 19
        %v959 = vpop.permute.xlu0 %958
        %960 = vrot.lane.b32.xlu0 %v825, 19
        %v961 = vpop.permute.xlu0 %960
        %vm962 = vcmask 154624
        %v963 = vsel %vm962, %v873, %v875
        %v964 = vsel %vm962, %v875, %v877
        %v965 = vsel %vm962, %v877, %v879
        %v966 = vsel %vm962, %v879, %v881
        %v967 = vsel %vm962, %v883, %v885
        %v968 = vsel %vm962, %v885, %v887
        %v969 = vsel %vm962, %v887, %v889
        %v970 = vsel %vm962, %v889, %v891
        %v971 = vsel %vm962, %v893, %v895
        %v972 = vsel %vm962, %v895, %v897
        %v973 = vsel %vm962, %v897, %v899
        %v974 = vsel %vm962, %v899, %v901
        %v975 = vsel %vm962, %v903, %v905
        %v976 = vsel %vm962, %v905, %v907
        %v977 = vsel %vm962, %v907, %v909
        %v978 = vsel %vm962, %v909, %v911
        %v979 = vsel %vm962, %v913, %v915
        %v980 = vsel %vm962, %v915, %v917
        %v981 = vsel %vm962, %v917, %v919
        %v982 = vsel %vm962, %v919, %v921
        %v983 = vsel %vm962, %v923, %v925
        %v984 = vsel %vm962, %v925, %v927
        %v985 = vsel %vm962, %v927, %v929
        %v986 = vsel %vm962, %v929, %v931
        %v987 = vsel %vm962, %v933, %v935
        %v988 = vsel %vm962, %v935, %v937
        %v989 = vsel %vm962, %v937, %v939
        %v990 = vsel %vm962, %v939, %v941
        %v991 = vsel %vm962, %v943, %v945
        %v992 = vsel %vm962, %v945, %v947
        %v993 = vsel %vm962, %v947, %v949
        %v994 = vsel %vm962, %v949, %v951
        %v995 = vsel %vm962, %v953, %v955
        %v996 = vsel %vm962, %v955, %v957
        %v997 = vsel %vm962, %v957, %v959
        %v998 = vsel %vm962, %v959, %v961
        %vm1035 = vcmask 130048
        %v1037 = vsel %vm1035, %v867, 0
        %v1040 = vsel %vm1035, %v869, 0
        %1042 = vmatprep.subr.bf16.mxu0 %v992
        %1043 = vmatpush1.bf16.msra.mxu0 %v991
        %1044 = vmatprep.subr.bf16.mxu0 %v988
        %1045 = vmatpush1.bf16.msra.mxu0 %v987
        %1046 = vmatprep.subr.bf16.mxu0 %v984
        %1047 = vmatpush1.bf16.msra.mxu0 %v983
        %1048 = vmatprep.subr.bf16.mxu0 %v980
        %1049 = vmatpush1.bf16.msra.mxu0 %v979
        %1050 = vmatprep.subr.bf16.mxu0 %v976
        %1051 = vmatpush1.bf16.msra.mxu0 %v975
        %1052 = vmatprep.subr.bf16.mxu0 %v972
        %1053 = vmatpush1.bf16.msra.mxu0 %v971
        %1054 = vmatprep.subr.bf16.mxu0 %v968
        %1055 = vmatpush1.bf16.msra.mxu0 %v967
        %1056 = vmatprep.subr.bf16.mxu0 %v964
        %1057 = vmatpush1.bf16.msra.mxu0 %v963
        %1058 = vmatprep.subr.bf16.mxu0 0
        %1059 = vmatpush2.bf16.msra.mxu0 0
        %1060 = vmatprep.subr.bf16.mxu0 0
        %1061 = vmatpush2.bf16.msra.mxu0 0
        %1062 = vmatprep.subr.bf16.mxu0 0
        %1063 = vmatpush2.bf16.msra.mxu0 0
        %1064 = vmatprep.subr.bf16.mxu0 0
        %1065 = vmatpush2.bf16.msra.mxu0 0
        %1066 = vmatprep.subr.bf16.mxu0 0
        %1067 = vmatpush2.bf16.msra.mxu0 0
        %1068 = vmatprep.subr.bf16.mxu0 0
        %1069 = vmatpush2.bf16.msra.mxu0 0
        %1070 = vmatprep.subr.bf16.mxu0 0
        %1071 = vmatpush2.bf16.msra.mxu0 0
        %1072 = vmatprep.subr.bf16.mxu0 %v996
        %1073 = vmatpush2.bf16.msra.mxu0 %v995
        %1074 = vmatprep.mubr.bf16.mxu0 %v1037
        %1075 = vmatmul.mubr.bf16.gmra.mxu0 %v866
        %v1076 = vpop.f32.mrf.mxu0
        %v1077 = vadd.f32 %v837, %v1076
        %v1078 = vpop.f32.mrf.mxu0
        %v1079 = vadd.f32 %v837, %v1078
        %v1080 = vpop.f32.mrf.mxu0
        %v1081 = vadd.f32 %v842, %v1080
        %v1082 = vpop.f32.mrf.mxu0
        %v1083 = vadd.f32 %v842, %v1082
        %1084 = vmatprep.mubr.bf16.mxu0 %v1040
        %1085 = vmatmul.mubr.bf16.gmra.mxu0 %v868
        %v1086 = vpop.f32.mrf.mxu0
        %v1087 = vadd.f32 %v847, %v1086
        %v1088 = vpop.f32.mrf.mxu0
        %v1089 = vadd.f32 %v847, %v1088
        %v1090 = vpop.f32.mrf.mxu0
        %v1091 = vadd.f32 %v852, %v1090
        %v1092 = vpop.f32.mrf.mxu0
        %v1093 = vadd.f32 %v852, %v1092
        %1094 = vdwg.mxu0
        %1095 = vmatprep.subr.bf16.mxu0 %v994
        %1096 = vmatpush1.bf16.msra.mxu0 %v993
        %1097 = vmatprep.subr.bf16.mxu0 %v990
        %1098 = vmatpush1.bf16.msra.mxu0 %v989
        %1099 = vmatprep.subr.bf16.mxu0 %v986
        %1100 = vmatpush1.bf16.msra.mxu0 %v985
        %1101 = vmatprep.subr.bf16.mxu0 %v982
        %1102 = vmatpush1.bf16.msra.mxu0 %v981
        %1103 = vmatprep.subr.bf16.mxu0 %v978
        %1104 = vmatpush1.bf16.msra.mxu0 %v977
        %1105 = vmatprep.subr.bf16.mxu0 %v974
        %1106 = vmatpush1.bf16.msra.mxu0 %v973
        %1107 = vmatprep.subr.bf16.mxu0 %v970
        %1108 = vmatpush1.bf16.msra.mxu0 %v969
        %1109 = vmatprep.subr.bf16.mxu0 %v966
        %1110 = vmatpush1.bf16.msra.mxu0 %v965
        %1111 = vmatprep.subr.bf16.mxu0 0
        %1112 = vmatpush2.bf16.msra.mxu0 0
        %1113 = vmatprep.subr.bf16.mxu0 0
        %1114 = vmatpush2.bf16.msra.mxu0 0
        %1115 = vmatprep.subr.bf16.mxu0 0
        %1116 = vmatpush2.bf16.msra.mxu0 0
        %1117 = vmatprep.subr.bf16.mxu0 0
        %1118 = vmatpush2.bf16.msra.mxu0 0
        %1119 = vmatprep.subr.bf16.mxu0 0
        %1120 = vmatpush2.bf16.msra.mxu0 0
        %1121 = vmatprep.subr.bf16.mxu0 0
        %1122 = vmatpush2.bf16.msra.mxu0 0
        %1123 = vmatprep.subr.bf16.mxu0 0
        %1124 = vmatpush2.bf16.msra.mxu0 0
        %1125 = vmatprep.subr.bf16.mxu0 %v998
        %1126 = vmatpush2.bf16.msra.mxu0 %v997
        %1127 = vmatprep.mubr.bf16.mxu0 %v1037
        %1128 = vmatmul.mubr.bf16.gmra.mxu0 %v866
        %v1129 = vpop.f32.mrf.mxu0
        %v1130 = vadd.f32 %v837, %v1129
        %v1131 = vpop.f32.mrf.mxu0
        %v1132 = vadd.f32 %v837, %v1131
        %v1133 = vpop.f32.mrf.mxu0
        %v1134 = vadd.f32 %v842, %v1133
        %v1135 = vpop.f32.mrf.mxu0
        %v1136 = vadd.f32 %v842, %v1135
        %1137 = vmatprep.mubr.bf16.mxu0 %v1040
        %1138 = vmatmul.mubr.bf16.gmra.mxu0 %v868
        %v1139 = vpop.f32.mrf.mxu0
        %v1140 = vadd.f32 %v847, %v1139
        %v1141 = vpop.f32.mrf.mxu0
        %v1142 = vadd.f32 %v847, %v1141
        %v1143 = vpop.f32.mrf.mxu0
        %v1144 = vadd.f32 %v852, %v1143
        %v1145 = vpop.f32.mrf.mxu0
        %v1146 = vadd.f32 %v852, %v1145
        %1147 = vdwg.mxu0
        %v1148 = vxor.u32 %v1077, 2147483648
        %v1149 = vxor.u32 %v1079, 2147483648
        %v1150 = vxor.u32 %v1130, 2147483648
        %v1151 = vxor.u32 %v1132, 2147483648
        %v1152 = vmul.f32 %v1148, 1.442695
        %v1153 = vpow.pop %v1152
        %v1154 = vmul.f32 %v1149, 1.442695
        %v1155 = vpow.pop %v1154
        %v1156 = vmul.f32 %v1150, 1.442695
        %v1157 = vpow.pop %v1156
        %v1158 = vmul.f32 %v1151, 1.442695
        %v1159 = vpow.pop %v1158
        %v1160 = vadd.f32 %v1153, 1.0
        %v1161 = vadd.f32 %v1155, 1.0
        %v1162 = vadd.f32 %v1157, 1.0
        %v1163 = vadd.f32 %v1159, 1.0
        %v1164 = vrcp.pop %v1160
        %v1165 = vmul.f32 1.0, %v1164
        %v1166 = vrcp.pop %v1161
        %v1167 = vmul.f32 1.0, %v1166
        %v1168 = vrcp.pop %v1162
        %v1169 = vmul.f32 1.0, %v1168
        %v1170 = vrcp.pop %v1163
        %v1171 = vmul.f32 1.0, %v1170
        %v1172 = vxor.u32 %v1081, 2147483648
        %v1173 = vxor.u32 %v1083, 2147483648
        %v1174 = vxor.u32 %v1134, 2147483648
        %v1175 = vxor.u32 %v1136, 2147483648
        %v1176 = vmul.f32 %v1172, 1.442695
        %v1177 = vpow.pop %v1176
        %v1178 = vmul.f32 %v1173, 1.442695
        %v1179 = vpow.pop %v1178
        %v1180 = vmul.f32 %v1174, 1.442695
        %v1181 = vpow.pop %v1180
        %v1182 = vmul.f32 %v1175, 1.442695
        %v1183 = vpow.pop %v1182
        %v1184 = vadd.f32 %v1177, 1.0
        %v1185 = vadd.f32 %v1179, 1.0
        %v1186 = vadd.f32 %v1181, 1.0
        %v1187 = vadd.f32 %v1183, 1.0
        %v1188 = vrcp.pop %v1184
        %v1189 = vmul.f32 1.0, %v1188
        %v1190 = vrcp.pop %v1185
        %v1191 = vmul.f32 1.0, %v1190
        %v1192 = vrcp.pop %v1186
        %v1193 = vmul.f32 1.0, %v1192
        %v1194 = vrcp.pop %v1187
        %v1195 = vmul.f32 1.0, %v1194
        %v1196 = vtanh.pop %v1087
        %v1197 = vtanh.pop %v1089
        %v1198 = vtanh.pop %v1140
        %v1199 = vtanh.pop %v1142
        %v1200 = vxor.u32 %v1091, 2147483648
        %v1201 = vxor.u32 %v1093, 2147483648
        %v1202 = vxor.u32 %v1144, 2147483648
        %v1203 = vxor.u32 %v1146, 2147483648
        %v1204 = vmul.f32 %v1200, 1.442695
        %v1205 = vpow.pop %v1204
        %v1206 = vmul.f32 %v1201, 1.442695
        %v1207 = vpow.pop %v1206
        %v1208 = vmul.f32 %v1202, 1.442695
        %v1209 = vpow.pop %v1208
        %v1210 = vmul.f32 %v1203, 1.442695
        %v1211 = vpow.pop %v1210
        %v1212 = vadd.f32 %v1205, 1.0
        %v1213 = vadd.f32 %v1207, 1.0
        %v1214 = vadd.f32 %v1209, 1.0
        %v1215 = vadd.f32 %v1211, 1.0
        %v1216 = vrcp.pop %v1212
        %v1217 = vmul.f32 1.0, %v1216
        %v1218 = vrcp.pop %v1213
        %v1219 = vmul.f32 1.0, %v1218
        %v1220 = vrcp.pop %v1214
        %v1221 = vmul.f32 1.0, %v1220
        %v1222 = vrcp.pop %v1215
        %v1223 = vmul.f32 1.0, %v1222
        %v1224 = vld [vmem:[%s636] sm:$0xff]
        %v1225 = vld [vmem:[%s636 + $0x8] sm:$0xff]
        %v1226 = vld [vmem:[%s636 + $0x10] sm:$0xff]
        %v1227 = vld [vmem:[%s636 + $0x18] sm:$0xff]
        %v1228 = vmul.f32 %v1189, %v1224
        %v1229 = vmul.f32 %v1191, %v1225
        %v1230 = vmul.f32 %v1193, %v1226
        %v1231 = vmul.f32 %v1195, %v1227
        %v1232 = vmul.f32 %v1165, %v1196
        %v1233 = vmul.f32 %v1167, %v1197
        %v1234 = vmul.f32 %v1169, %v1198
        %v1235 = vmul.f32 %v1171, %v1199
        %v1236 = vadd.f32 %v1228, %v1232
        %v1237 = vadd.f32 %v1229, %v1233
        %v1238 = vadd.f32 %v1230, %v1234
        %v1239 = vadd.f32 %v1231, %v1235
        %v1240 = vld [vmem:[%s570] sm:$0xf]
        %v1242 = vlaneseq
        %v1243 = vshrl.u32 %v1242, 7
        %v1244 = vsub.s32 0, %v1243
        %v1245 = vrot.slane %v1240, %v1244
        %v1246 = vlaneseq
        %v1247 = vshrl.u32 %v1246, 7
        %v1248 = vsub.s32 1, %v1247
        %v1249 = vrot.slane %v1240, %v1248
        %v1250 = vlaneseq
        %v1251 = vshrl.u32 %v1250, 7
        %v1252 = vsub.s32 2, %v1251
        %v1253 = vrot.slane %v1240, %v1252
        %v1254 = vlaneseq
        %v1255 = vshrl.u32 %v1254, 7
        %v1256 = vsub.s32 3, %v1255
        %v1257 = vrot.slane %v1240, %v1256
        %v1262 = vmul.f32 %v1236, %v1245
        %v1263 = vmul.f32 %v1237, %v1249
        %v1264 = vmul.f32 %v1238, %v1253
        %v1265 = vmul.f32 %v1239, %v1257
        %v1266 = vtanh.pop %v1262
        %v1267 = vtanh.pop %v1263
        %v1268 = vtanh.pop %v1264
        %v1269 = vtanh.pop %v1265
        %v1270 = vmul.f32 %v1217, %v1266
        %v1271 = vmul.f32 %v1219, %v1267
        %v1272 = vmul.f32 %v1221, %v1268
        %v1273 = vmul.f32 %v1223, %v1269
        %1274 = vst [vmem:[%s642] sm:$0xff] %v1270
        %1275 = vst [vmem:[%s642 + $0x8] sm:$0xff] %v1271
        %1276 = vst [vmem:[%s642 + $0x10] sm:$0xff] %v1272
        %1277 = vst [vmem:[%s642 + $0x18] sm:$0xff] %v1273
        %1278 = vst [vmem:[%s566] sm:$0xff] %v1262
        %1279 = vst [vmem:[%s566 + $0x8] sm:$0xff] %v1263
        %1280 = vst [vmem:[%s566 + $0x10] sm:$0xff] %v1264
        %1281 = vst [vmem:[%s566 + $0x18] sm:$0xff] %v1265
        %s1282 = smul.u32 4, %s26
        %p1283 = scmp.lt.s32.totalorder %s1282, 7
        %s1284 = scalar_select %p1283, %s1282, 7
        %s1285 = smul.addr %s1284, 8
        %s1286 = scalar_lea.vmem %s10, %s1285
        %s1287 = sand.u32 %s342, 1
        %s1288 = scalar_lea.sflag [#allocation3], %s1287
        %s1289 = sand.u32 %s342, 1
        %s1290 = smul.addr %s1289, 32
        %s1291 = scalar_lea.vmem [#allocation2], %s1290
        // Predicated region
        $region61: #{conv_lstm_step.1} parent=59 // pred_check
          %p1292 = pneg %p326
        $region62: #{conv_lstm_step.1} parent=59 // pred_check_branch
          %1294 = sbr.rel (%p1292) target = $region64
        $region63: #{conv_lstm_step.1} parent=59 // pred_region
          %s1295 = smul.u32 4, %s26
        $region64: #{conv_lstm_step.1} parent=59 // pred_fallthru
          _
        // Predicated region
        $region65: #{conv_lstm_step.1} parent=59 // pred_check
          %p1296 = pneg %p352
        $region66: #{conv_lstm_step.1} parent=59 // pred_check_branch
          %1298 = sbr.rel (%p1296) target = $region68
        $region67: #{conv_lstm_step.1} parent=59 // pred_region
          %s1299 = smul.u32 4, %s26
          %s1301 = ssub.s32 512, 512
          %1302 = vsyncadd %s1288, %s1301
          %s1303 = smul.addr %s1299, 128
          %s1304 = scalar_lea.hbm %s11, %s1303
          %s1306 = sshll.u32 %s1291, 4
          %s1307 = int_to_ptr.vmem [resolvable:$true] %s1306
          %1309 = dma.vmem_to_hbm [thread:$0]  %s1307, 512, %s1304, %s1288
        $region68: #{conv_lstm_step.1} parent=59 // pred_fallthru
          _
      $region60: #{conv_lstm_step.1} parent=5 // pred_fallthru
        _
      %p1310 = scmp.le.s32.totalorder 2, %s21
      // Predicated region
      $region69: #{conv_lstm_step.1} parent=5 // pred_check
        %p1311 = pneg %p1310
      $region70: #{conv_lstm_step.1} parent=5 // pred_check_branch
        %1313 = sbr.rel (%p1311) target = $region72
      $region71: #{conv_lstm_step.1} parent=5 // pred_region
        %s1314 = ssub.s32 %s21, 2
        // Predicated region
        $region73: #{conv_lstm_step.1} parent=71 // pred_check
          %p1315 = pneg %p332
        $region74: #{conv_lstm_step.1} parent=71 // pred_check_branch
          %1317 = sbr.rel (%p1315) target = $region76
        $region75: #{conv_lstm_step.1} parent=71 // pred_region
          %s1318 = smul.u32 4, %s27
          %p1319 = scmp.lt.s32.totalorder %s1318, 7
          %s1320 = scalar_select %p1319, %s1318, 7
          %s1321 = smul.addr %s1320, 8
          %s1322 = scalar_lea.vmem %s10, %s1321
        $region76: #{conv_lstm_step.1} parent=71 // pred_fallthru
          _
        // Predicated region
        $region77: #{conv_lstm_step.1} parent=71 // pred_check
          %p1323 = pneg %p358
        $region78: #{conv_lstm_step.1} parent=71 // pred_check_branch
          %1325 = sbr.rel (%p1323) target = $region80
        $region79: #{conv_lstm_step.1} parent=71 // pred_region
          %s1326 = sand.u32 %s343, 1
          %s1327 = scalar_lea.sflag [#allocation3], %s1326
          %s1328 = sand.u32 %s343, 1
          %s1329 = smul.addr %s1328, 32
          %s1330 = scalar_lea.vmem [#allocation2], %s1329
          %1331 = dma.done %s1327, 512
        $region80: #{conv_lstm_step.1} parent=71 // pred_fallthru
          _
      $region72: #{conv_lstm_step.1} parent=5 // pred_fallthru
        _
    $region6: #{conv_lstm_step.1} parent=1 // loop_footer
      %s25 = sadd.s32 1, %s21
    $region7: #{conv_lstm_step.1} parent=1 // loop_footer_branch
      %20 = sbr.rel target = $region3
    $region8: #{conv_lstm_step.1} parent=1 // loop_exit
      _
    %1332 = vsyncpa [#allocation3], 1
    %s1333 = scalar_lea.sflag [#allocation3], 1
    %1334 = vsyncpa %s1333, 1

</llo_original>
